<compile_context>
chip_gen: v7x
topology: tpu7x:2x2x1
jax: 0.10.0
libtpu: 0.0.40
codegen_flags: <defaults>
</compile_context>

<pallas_src>
import functools

import jax
import jax.numpy as jnp
from jax.experimental import pallas as pl
from jax.experimental.pallas import tpu as pltpu

LANE = 128


def _round_up(n, m):
    return ((n + m - 1) // m) * m


def _pad2d(x, rows=None, cols=None):
    r, c = x.shape
    return jnp.pad(x, ((0, (rows or r) - r), (0, (cols or c) - c)))


def _fold_bn(w, b, gamma, beta, mean, var, eps=1e-5):
    """Fold inference-mode BatchNorm1d into the preceding linear map (eval only)."""
    scale = gamma * jax.lax.rsqrt(var + eps)          # [1, Dh]
    return w * scale, (b - mean) * scale + beta


def _vmem_limit_bytes():
    # ~100 MiB ceiling on v5e/v6e (128 MiB physical VMEM), ~51 MiB on v7x (64 MiB).
    try:
        cap = getattr(pltpu.get_tpu_info(), "vmem_capacity_bytes", 64 * 2**20)
    except Exception:
        cap = 64 * 2**20
    return int(min(cap * 4 // 5, 100 * 2**20))


# ----------------------------------------------------------------------------
# Fused kernel.
# ----------------------------------------------------------------------------
def _fused_gcn_kernel(num_conv, n_real, a_ref, h_ref, *refs):
    """refs = (w_0, b_0, ..., w_{L-1}, b_{L-1}, w_pred, b_pred, out_ref)."""
    out_ref = refs[-1]
    p_refs = refs[:-1]
    wp_ref, bp_ref = p_refs[2 * num_conv], p_refs[2 * num_conv + 1]

    a = a_ref[...]                                    # bf16 [Np, Np], fetched once
    n_p = a.shape[0]

    # --- degree vectors via MXU ones-matmuls (no f32 copy of A, no XLU reduction).
    ones_col = jnp.ones((n_p, 1), jnp.bfloat16)
    ones_row = jnp.ones((1, n_p), jnp.bfloat16)
    deg_dst = jnp.dot(a, ones_col, preferred_element_type=jnp.float32)     # [Np,1]
    deg_src = jnp.dot(ones_row, a, preferred_element_type=jnp.float32)     # [1,Np]
    inv_dst = jnp.where(deg_dst > 0.0, jax.lax.rsqrt(jnp.maximum(deg_dst, 1.0)), 0.0)
    inv_src = jnp.where(deg_src > 0.0, jax.lax.rsqrt(jnp.maximum(deg_src, 1.0)), 0.0)
    inv_src_col = jnp.transpose(inv_src)                                   # [Np,1]

    # --- GraphConv stack (BN folded into w/b), Python-unrolled over layers.
    #     A_hat @ X is evaluated as inv_dst * (A @ (inv_src_col * X)); A_hat is
    #     never materialized. hidden stays bf16; matmuls accumulate in f32.
    hidden = h_ref[...]                               # bf16 [Np, prev_p]
    for i in range(num_conv):
        w = p_refs[2 * i][...]                        # f32 [prev_p, hid_p] (BN folded)
        b = p_refs[2 * i + 1][...]                    # f32 [1, hid_p]
        prev_p, hid_lp = w.shape
        if prev_p > hid_lp:
            # Project first: shrinks the dominant N^2 * D term to N^2 * hid_lp.
            hw = jnp.dot(hidden, w, preferred_element_type=jnp.float32)
            hs = (hw * inv_src_col).astype(jnp.bfloat16)
            z = jnp.dot(a, hs, preferred_element_type=jnp.float32) * inv_dst + b
        else:
            hs = (hidden.astype(jnp.float32) * inv_src_col).astype(jnp.bfloat16)
            agg = jnp.dot(a, hs, preferred_element_type=jnp.float32) * inv_dst
            z = jnp.dot(agg, w, preferred_element_type=jnp.float32) + b
        act = jnp.maximum(z, 0.0)                     # ReLU(BN(GraphConv(h)))
        new_h = act if i == 0 else act + hidden.astype(jnp.float32)   # residual i>0
        hidden = new_h.astype(jnp.bfloat16)

    # --- epilogue: SumPooling over REAL node rows (padded rows masked out) routed
    #     through the MXU as a ones-row matmul, then prediction Linear.
    node_ids = jax.lax.broadcasted_iota(jnp.int32, (1, n_p), 1)
    pool_mask = (node_ids < n_real).astype(jnp.bfloat16)
    pooled = jnp.dot(pool_mask, hidden, preferred_element_type=jnp.float32)  # [1,hid_p]
    out_ref[...] = (jnp.dot(pooled, wp_ref[...], preferred_element_type=jnp.float32)
                    + bp_ref[...])


# ----------------------------------------------------------------------------
# Wrapper: fold BN, pad node/feature dims, bf16 A/h, single pallas_call.
# ----------------------------------------------------------------------------
def gcn_forward(a, h, params):
    num_conv = len(params["layers"])
    n = a.shape[0]
    in_dim = h.shape[1]
    hid_dim = params["layers"][0]["w"].shape[1]
    out_dim = params["w_pred"].shape[1]

    n_p = _round_up(n, LANE)      # node dim padded -> (8,128)-dense A / hidden tiles
    in_p = _round_up(in_dim, LANE)
    hid_p = _round_up(hid_dim, LANE)
    out_p = _round_up(out_dim, LANE)
    # TODO(synk): on v6e/v7x, round MXU-facing dims that exceed 128 up to multiples
    #             of 256 to fill the 256-wide MXU (128 is already ideal on v5e).

    # bf16 adjacency (0/1 exact) halves HBM DMA and VMEM residency of the dominant
    # input; bf16 hidden halves the activation footprint. Zero padding of feature
    # lanes stays exactly zero through matmul + folded bias + ReLU + residual.
    a_p = _pad2d(a, rows=n_p, cols=n_p).astype(jnp.bfloat16)
    h_p = _pad2d(h, rows=n_p, cols=in_p).astype(jnp.bfloat16)

    flat = [a_p, h_p]
    prev = in_p
    for lyr in params["layers"]:
        w_f, b_f = _fold_bn(lyr["w"], lyr["b"], lyr["gamma"], lyr["beta"],
                            lyr["mean"], lyr["var"])
        flat.append(_pad2d(w_f, rows=prev, cols=hid_p))
        flat.append(_pad2d(b_f, cols=hid_p))
        prev = hid_p
    flat.append(_pad2d(params["w_pred"], rows=hid_p, cols=out_p))
    flat.append(_pad2d(params["b_pred"], cols=out_p))

    vmem = pl.BlockSpec(memory_space=pltpu.MemorySpace.VMEM)
    score_p = pl.pallas_call(
        functools.partial(_fused_gcn_kernel, num_conv, n),
        out_shape=jax.ShapeDtypeStruct((1, out_p), jnp.float32),
        in_specs=[vmem] * len(flat),
        out_specs=vmem,
        compiler_params=pltpu.CompilerParams(vmem_limit_bytes=_vmem_limit_bytes()),
    )(*flat)

    # TODO(synk): final_dropout is identity in inference mode (nn.Dropout.eval()).
    # TODO(synk): for N >~ 2K, switch to a row-block grid (grid=(num_conv, N//TM),
    #             row axis "parallel" for megacore/v7x dual-TC) streaming A row
    #             blocks via BlockSpec index_map with hidden double-buffered in VMEM
    #             scratch, making VMEM O(TM*N) instead of O(N^2).
    return score_p[:, :out_dim]


# ----------------------------------------------------------------------------
# Pure-JAX f32 reference (unfused BN) for correctness checking.
# ----------------------------------------------------------------------------
def gcn_reference(a, h, params, eps=1e-5):
    deg_dst = jnp.sum(a, axis=1, keepdims=True)
    deg_src = jnp.sum(a, axis=0, keepdims=True)
    inv_dst = jnp.where(deg_dst > 0.0, jax.lax.rsqrt(jnp.maximum(deg_dst, 1.0)), 0.0)
    inv_src = jnp.where(deg_src > 0.0, jax.lax.rsqrt(jnp.maximum(deg_src, 1.0)), 0.0)
    a_hat = a * inv_dst * inv_src
    hidden = h
    for i, lyr in enumerate(params["layers"]):
        z = (a_hat @ hidden) @ lyr["w"] + lyr["b"]
        zn = (z - lyr["mean"]) * jax.lax.rsqrt(lyr["var"] + eps) * lyr["gamma"] + lyr["beta"]
        act = jnp.maximum(zn, 0.0)
        hidden = act if i == 0 else act + hidden
    pooled = jnp.sum(hidden, axis=0, keepdims=True)
    return pooled @ params["w_pred"] + params["b_pred"]


def init_params(num_layers, input_dim, hidden_dim, output_dim):
    layers = []
    in_dim = input_dim
    keys = jax.random.split(jax.random.PRNGKey(1), num_layers - 1)
    for i in range(num_layers - 1):
        kw, kb, kg, kbe = jax.random.split(keys[i], 4)
        layers.append(dict(
            w=(jax.random.normal(kw, (in_dim, hidden_dim), jnp.float32)
               / jnp.sqrt(float(in_dim))),
            b=0.01 * jax.random.normal(kb, (1, hidden_dim), jnp.float32),
            gamma=1.0 + 0.1 * jax.random.normal(kg, (1, hidden_dim), jnp.float32),
            beta=0.1 * jax.random.normal(kbe, (1, hidden_dim), jnp.float32),
            mean=jnp.zeros((1, hidden_dim), jnp.float32),   # BatchNorm running stats
            var=jnp.ones((1, hidden_dim), jnp.float32),
        ))
        in_dim = hidden_dim

    kp, kpb = jax.random.split(jax.random.PRNGKey(2))
    w_pred = (jax.random.normal(kp, (hidden_dim, output_dim), jnp.float32)
              / jnp.sqrt(float(hidden_dim)))
    b_pred = 0.01 * jax.random.normal(kpb, (1, output_dim), jnp.float32)
    return dict(layers=layers, w_pred=w_pred, b_pred=b_pred)


if __name__ == "__main__":
    N, input_dim, hidden_dim, output_dim = 16, 8, 32, 4
    num_layers = 3                      # -> 2 GraphConv layers
    key = jax.random.PRNGKey(0)
    k_adj, k_h = jax.random.split(key)

    # Deterministic symmetric adjacency with self-loops (no zero-degree nodes).
    a_rand = jax.random.uniform(k_adj, (N, N))
    a = ((a_rand + a_rand.T) > 1.0).astype(jnp.float32)
    a = jnp.maximum(a, jnp.eye(N, dtype=jnp.float32))

    h = jax.random.normal(k_h, (N, input_dim), jnp.float32)
    params = init_params(num_layers, input_dim, hidden_dim, output_dim)

    score = jax.jit(gcn_forward)(a, h, params)
    jax.block_until_ready(score)
    assert score.shape == (1, output_dim)

    score_ref = gcn_reference(a, h, params)
    max_err = float(jnp.max(jnp.abs(score - score_ref)))
    assert bool(jnp.allclose(score, score_ref, rtol=2e-2, atol=5e-2)), (
        score, score_ref, max_err)

    print("KERNEL_OK")
</pallas_src>

<mosaic_0001>
module attributes {stable_mosaic.version = 11 : i64} {
  func.func @_fused_gcn_kernel(%arg0: memref<128x128xbf16, #tpu.memory_space<vmem>>, %arg1: memref<128x128xbf16, #tpu.memory_space<vmem>>, %arg2: memref<128x128xf32, #tpu.memory_space<vmem>>, %arg3: memref<1x128xf32, #tpu.memory_space<vmem>>, %arg4: memref<128x128xf32, #tpu.memory_space<vmem>>, %arg5: memref<1x128xf32, #tpu.memory_space<vmem>>, %arg6: memref<128x128xf32, #tpu.memory_space<vmem>>, %arg7: memref<1x128xf32, #tpu.memory_space<vmem>>, %arg8: memref<1x128xf32, #tpu.memory_space<vmem>>) attributes {dimension_semantics = [], scalar_prefetch = 0 : i64, scratch_operands = 0 : i64, tpu.core_type = #tpu.core_type<tc>} {
    %c0 = arith.constant 0 : index
    %c0_0 = arith.constant 0 : index
    %0 = vector.load %arg0[%c0, %c0_0] : memref<128x128xbf16, #tpu.memory_space<vmem>>, vector<128x128xbf16>
    %cst = arith.constant 1.000000e+00 : bf16
    %1 = vector.broadcast %cst : bf16 to vector<128x1xbf16>
    %cst_1 = arith.constant 1.000000e+00 : bf16
    %2 = vector.broadcast %cst_1 : bf16 to vector<1x128xbf16>
    %cst_2 = arith.constant dense<0.000000e+00> : vector<128x1xf32>
    %3 = tpu.matmul %0, %1, %cst_2 {dimension_numbers = #tpu.dot_dimension_numbers<[1], [0], [0], [1], [0, 0, 1, 1], [], []>} : vector<128x128xbf16>, vector<128x1xbf16>, vector<128x1xf32> -> vector<128x1xf32>
    %cst_3 = arith.constant dense<0.000000e+00> : vector<1x128xf32>
    %4 = tpu.matmul %2, %0, %cst_3 {dimension_numbers = #tpu.dot_dimension_numbers<[1], [0], [0], [1], [0, 0, 1, 1], [], []>} : vector<1x128xbf16>, vector<128x128xbf16>, vector<1x128xf32> -> vector<1x128xf32>
    %cst_4 = arith.constant 0.000000e+00 : f32
    %5 = vector.broadcast %cst_4 : f32 to vector<128x1xf32>
    %6 = arith.cmpf ogt, %3, %5 : vector<128x1xf32>
    %cst_5 = arith.constant 1.000000e+00 : f32
    %7 = vector.broadcast %cst_5 : f32 to vector<128x1xf32>
    %8 = arith.maximumf %3, %7 : vector<128x1xf32>
    %9 = math.rsqrt %8 : vector<128x1xf32>
    %cst_6 = arith.constant 0.000000e+00 : f32
    %10 = vector.broadcast %cst_6 : f32 to vector<128x1xf32>
    %11 = arith.select %6, %9, %10 : vector<128x1xi1>, vector<128x1xf32>
    %cst_7 = arith.constant 0.000000e+00 : f32
    %12 = vector.broadcast %cst_7 : f32 to vector<1x128xf32>
    %13 = arith.cmpf ogt, %4, %12 : vector<1x128xf32>
    %cst_8 = arith.constant 1.000000e+00 : f32
    %14 = vector.broadcast %cst_8 : f32 to vector<1x128xf32>
    %15 = arith.maximumf %4, %14 : vector<1x128xf32>
    %16 = math.rsqrt %15 : vector<1x128xf32>
    %cst_9 = arith.constant 0.000000e+00 : f32
    %17 = vector.broadcast %cst_9 : f32 to vector<1x128xf32>
    %18 = arith.select %13, %16, %17 : vector<1x128xi1>, vector<1x128xf32>
    %19 = tpu.transpose %18, [1, 0] : vector<1x128xf32> -> vector<128x1xf32>
    %c0_10 = arith.constant 0 : index
    %c0_11 = arith.constant 0 : index
    %20 = vector.load %arg1[%c0_10, %c0_11] : memref<128x128xbf16, #tpu.memory_space<vmem>>, vector<128x128xbf16>
    %c0_12 = arith.constant 0 : index
    %c0_13 = arith.constant 0 : index
    %21 = vector.load %arg2[%c0_12, %c0_13] : memref<128x128xf32, #tpu.memory_space<vmem>>, vector<128x128xf32>
    %c0_14 = arith.constant 0 : index
    %c0_15 = arith.constant 0 : index
    %22 = vector.load %arg3[%c0_14, %c0_15] : memref<1x128xf32, #tpu.memory_space<vmem>>, vector<1x128xf32>
    %23 = arith.extf %20 : vector<128x128xbf16> to vector<128x128xf32>
    %24 = vector.broadcast %19 : vector<128x1xf32> to vector<128x128xf32>
    %25 = arith.mulf %23, %24 : vector<128x128xf32>
    %26 = arith.truncf %25 : vector<128x128xf32> to vector<128x128xbf16>
    %cst_16 = arith.constant dense<0.000000e+00> : vector<128x128xf32>
    %27 = tpu.matmul %0, %26, %cst_16 {dimension_numbers = #tpu.dot_dimension_numbers<[1], [0], [0], [1], [0, 0, 1, 1], [], []>} : vector<128x128xbf16>, vector<128x128xbf16>, vector<128x128xf32> -> vector<128x128xf32>
    %28 = vector.broadcast %11 : vector<128x1xf32> to vector<128x128xf32>
    %29 = arith.mulf %27, %28 : vector<128x128xf32>
    %cst_17 = arith.constant dense<0.000000e+00> : vector<128x128xf32>
    %30 = tpu.matmul %29, %21, %cst_17 {dimension_numbers = #tpu.dot_dimension_numbers<[1], [0], [0], [1], [0, 0, 1, 1], [], []>} : vector<128x128xf32>, vector<128x128xf32>, vector<128x128xf32> -> vector<128x128xf32>
    %31 = vector.broadcast %22 : vector<1x128xf32> to vector<128x128xf32>
    %32 = arith.addf %30, %31 : vector<128x128xf32>
    %cst_18 = arith.constant 0.000000e+00 : f32
    %33 = vector.broadcast %cst_18 : f32 to vector<128x128xf32>
    %34 = arith.maximumf %32, %33 : vector<128x128xf32>
    %35 = arith.truncf %34 : vector<128x128xf32> to vector<128x128xbf16>
    %c0_19 = arith.constant 0 : index
    %c0_20 = arith.constant 0 : index
    %36 = vector.load %arg4[%c0_19, %c0_20] : memref<128x128xf32, #tpu.memory_space<vmem>>, vector<128x128xf32>
    %c0_21 = arith.constant 0 : index
    %c0_22 = arith.constant 0 : index
    %37 = vector.load %arg5[%c0_21, %c0_22] : memref<1x128xf32, #tpu.memory_space<vmem>>, vector<1x128xf32>
    %38 = arith.extf %35 : vector<128x128xbf16> to vector<128x128xf32>
    %39 = vector.broadcast %19 : vector<128x1xf32> to vector<128x128xf32>
    %40 = arith.mulf %38, %39 : vector<128x128xf32>
    %41 = arith.truncf %40 : vector<128x128xf32> to vector<128x128xbf16>
    %cst_23 = arith.constant dense<0.000000e+00> : vector<128x128xf32>
    %42 = tpu.matmul %0, %41, %cst_23 {dimension_numbers = #tpu.dot_dimension_numbers<[1], [0], [0], [1], [0, 0, 1, 1], [], []>} : vector<128x128xbf16>, vector<128x128xbf16>, vector<128x128xf32> -> vector<128x128xf32>
    %43 = vector.broadcast %11 : vector<128x1xf32> to vector<128x128xf32>
    %44 = arith.mulf %42, %43 : vector<128x128xf32>
    %cst_24 = arith.constant dense<0.000000e+00> : vector<128x128xf32>
    %45 = tpu.matmul %44, %36, %cst_24 {dimension_numbers = #tpu.dot_dimension_numbers<[1], [0], [0], [1], [0, 0, 1, 1], [], []>} : vector<128x128xf32>, vector<128x128xf32>, vector<128x128xf32> -> vector<128x128xf32>
    %46 = vector.broadcast %37 : vector<1x128xf32> to vector<128x128xf32>
    %47 = arith.addf %45, %46 : vector<128x128xf32>
    %cst_25 = arith.constant 0.000000e+00 : f32
    %48 = vector.broadcast %cst_25 : f32 to vector<128x128xf32>
    %49 = arith.maximumf %47, %48 : vector<128x128xf32>
    %50 = arith.extf %35 : vector<128x128xbf16> to vector<128x128xf32>
    %51 = arith.addf %49, %50 : vector<128x128xf32>
    %52 = arith.truncf %51 : vector<128x128xf32> to vector<128x128xbf16>
    %53 = tpu.iota {dimensions = array<i32: 1>} : vector<1x128xi32>
    %c16_i32 = arith.constant 16 : i32
    %54 = vector.broadcast %c16_i32 : i32 to vector<1x128xi32>
    %55 = arith.cmpi slt, %53, %54 : vector<1x128xi32>
    %56 = arith.extui %55 : vector<1x128xi1> to vector<1x128xi32>
    %57 = arith.sitofp %56 : vector<1x128xi32> to vector<1x128xf32>
    %58 = arith.truncf %57 : vector<1x128xf32> to vector<1x128xbf16>
    %cst_26 = arith.constant dense<0.000000e+00> : vector<1x128xf32>
    %59 = tpu.matmul %58, %52, %cst_26 {dimension_numbers = #tpu.dot_dimension_numbers<[1], [0], [0], [1], [0, 0, 1, 1], [], []>} : vector<1x128xbf16>, vector<128x128xbf16>, vector<1x128xf32> -> vector<1x128xf32>
    %c0_27 = arith.constant 0 : index
    %c0_28 = arith.constant 0 : index
    %60 = vector.load %arg6[%c0_27, %c0_28] : memref<128x128xf32, #tpu.memory_space<vmem>>, vector<128x128xf32>
    %cst_29 = arith.constant dense<0.000000e+00> : vector<1x128xf32>
    %61 = tpu.matmul %59, %60, %cst_29 {dimension_numbers = #tpu.dot_dimension_numbers<[1], [0], [0], [1], [0, 0, 1, 1], [], []>} : vector<1x128xf32>, vector<128x128xf32>, vector<1x128xf32> -> vector<1x128xf32>
    %c0_30 = arith.constant 0 : index
    %c0_31 = arith.constant 0 : index
    %62 = vector.load %arg7[%c0_30, %c0_31] : memref<1x128xf32, #tpu.memory_space<vmem>>, vector<1x128xf32>
    %63 = arith.addf %61, %62 : vector<1x128xf32>
    %c0_32 = arith.constant 0 : index
    %c0_33 = arith.constant 0 : index
    %64 = vector.load %arg8[%c0_32, %c0_33] : memref<1x128xf32, #tpu.memory_space<vmem>>, vector<1x128xf32>
    tpu.vector_store %arg8[%c0_32, %c0_33], %63 {strides = array<i32>} : memref<1x128xf32, #tpu.memory_space<vmem>>, vector<1x128xf32>,
    return
  }
}

</mosaic_0001>

<llo_original>
// kernel: gcn_forward.1
$region0: #{gcn_forward.1}
  #allocation0 [shape = 'u32[]', space=smem, size = 0x4, offset = 0x4, fixed_abs, tag = 'smem constant byte address 0x4 - core index']
  #allocation1 [shape = 'u32[144,128]{1,0:T(1,128)}', space=vmem, size = 0x12000, scoped, tag = 'internal scratch']
  %s0 = inlined_call_operand.vmem [shape: bf16[128,128], index: 0, kind: input, shape index: {}]
  %s1 = inlined_call_operand.vmem [shape: bf16[128,128], index: 1, kind: input, shape index: {}]
  %s2 = inlined_call_operand.vmem [shape: f32[128,128], index: 2, kind: input, shape index: {}]
  %s3 = inlined_call_operand.vmem [shape: f32[1,128], index: 3, kind: input, shape index: {}]
  %s4 = inlined_call_operand.vmem [shape: f32[128,128], index: 4, kind: input, shape index: {}]
  %s5 = inlined_call_operand.vmem [shape: f32[1,128], index: 5, kind: input, shape index: {}]
  %s6 = inlined_call_operand.vmem [shape: f32[128,128], index: 6, kind: input, shape index: {}]
  %s7 = inlined_call_operand.vmem [shape: f32[1,128], index: 7, kind: input, shape index: {}]
  %s8 = inlined_call_operand.hbm [shape: f32[1,128], index: 8, kind: output, shape index: {}]
  %s9 = sld [smem:[#allocation0]]
  $region42: #{gcn_forward.1} parent=0
    _
  %s11 = ssub.s32 1, %s9
  %s12 = scalar_select 0, %s11, %s9
  $region1: #{gcn_forward.1} parent=0
    #allocation2 [shape = 'u8[512]{0}', space=vmem, size = 0x400, scoped, tag = 'output window, operand 0, single buffered']
    #allocation3 [shape = 's32[1]{0}', space=sflag, size = 0x4, scoped, tag = 'scoped memory for gcn_forward.1']
    %13 = vsyncpa [#allocation3], 0
    // Predicated region
    $region2: #{gcn_forward.1} parent=1 // pred_check
      _
    $region3: #{gcn_forward.1} parent=1 // pred_check_branch
      %15 = sbr.rel (0) target = $region5
    $region4: #{gcn_forward.1} parent=1 // pred_region
      _
    $region5: #{gcn_forward.1} parent=1 // pred_fallthru
      _
    // Predicated region
    $region6: #{gcn_forward.1} parent=1 // pred_check
      _
    $region7: #{gcn_forward.1} parent=1 // pred_check_branch
      %17 = sbr.rel (0) target = $region9
    $region8: #{gcn_forward.1} parent=1 // pred_region
      _
    $region9: #{gcn_forward.1} parent=1 // pred_fallthru
      _
    // Predicated region
    $region10: #{gcn_forward.1} parent=1 // pred_check
      _
    $region11: #{gcn_forward.1} parent=1 // pred_check_branch
      %19 = sbr.rel (0) target = $region13
    $region12: #{gcn_forward.1} parent=1 // pred_region
      _
    $region13: #{gcn_forward.1} parent=1 // pred_fallthru
      _
    // Predicated region
    $region14: #{gcn_forward.1} parent=1 // pred_check
      _
    $region15: #{gcn_forward.1} parent=1 // pred_check_branch
      %21 = sbr.rel (0) target = $region17
    $region16: #{gcn_forward.1} parent=1 // pred_region
      _
    $region17: #{gcn_forward.1} parent=1 // pred_fallthru
      _
    // Predicated region
    $region18: #{gcn_forward.1} parent=1 // pred_check
      _
    $region19: #{gcn_forward.1} parent=1 // pred_check_branch
      %23 = sbr.rel (0) target = $region21
    $region20: #{gcn_forward.1} parent=1 // pred_region
      _
    $region21: #{gcn_forward.1} parent=1 // pred_fallthru
      _
    // Predicated region
    $region22: #{gcn_forward.1} parent=1 // pred_check
      _
    $region23: #{gcn_forward.1} parent=1 // pred_check_branch
      %25 = sbr.rel (0) target = $region25
    $region24: #{gcn_forward.1} parent=1 // pred_region
      _
    $region25: #{gcn_forward.1} parent=1 // pred_fallthru
      _
    // Predicated region
    $region26: #{gcn_forward.1} parent=1 // pred_check
      _
    $region27: #{gcn_forward.1} parent=1 // pred_check_branch
      %27 = sbr.rel (0) target = $region29
    $region28: #{gcn_forward.1} parent=1 // pred_region
      _
    $region29: #{gcn_forward.1} parent=1 // pred_fallthru
      _
    // Predicated region
    $region30: #{gcn_forward.1} parent=1 // pred_check
      _
    $region31: #{gcn_forward.1} parent=1 // pred_check_branch
      %29 = sbr.rel (0) target = $region33
    $region32: #{gcn_forward.1} parent=1 // pred_region
      _
    $region33: #{gcn_forward.1} parent=1 // pred_fallthru
      _
    %v32 = vld [vmem:[%s0] sm:$0xf]
    %v33 = vld [vmem:[%s0 + $0x4] sm:$0xf]
    %v34 = vld [vmem:[%s0 + $0x8] sm:$0xf]
    %v35 = vld [vmem:[%s0 + $0xc] sm:$0xf]
    %v36 = vld [vmem:[%s0 + $0x10] sm:$0xf]
    %v37 = vld [vmem:[%s0 + $0x14] sm:$0xf]
    %v38 = vld [vmem:[%s0 + $0x18] sm:$0xf]
    %v39 = vld [vmem:[%s0 + $0x1c] sm:$0xf]
    %v40 = vld [vmem:[%s0 + $0x20] sm:$0xf]
    %v41 = vld [vmem:[%s0 + $0x24] sm:$0xf]
    %v42 = vld [vmem:[%s0 + $0x28] sm:$0xf]
    %v43 = vld [vmem:[%s0 + $0x2c] sm:$0xf]
    %v44 = vld [vmem:[%s0 + $0x30] sm:$0xf]
    %v45 = vld [vmem:[%s0 + $0x34] sm:$0xf]
    %v46 = vld [vmem:[%s0 + $0x38] sm:$0xf]
    %v47 = vld [vmem:[%s0 + $0x3c] sm:$0xf]
    %v64 = vunpack.c.l.b16 %v32
    %v65 = vunpack.c.l.b16 %v33
    %v66 = vunpack.c.l.b16 %v34
    %v67 = vunpack.c.l.b16 %v35
    %v68 = vunpack.c.l.b16 %v36
    %v69 = vunpack.c.l.b16 %v37
    %v70 = vunpack.c.l.b16 %v38
    %v71 = vunpack.c.l.b16 %v39
    %v72 = vunpack.c.l.b16 %v40
    %v73 = vunpack.c.l.b16 %v41
    %v74 = vunpack.c.l.b16 %v42
    %v75 = vunpack.c.l.b16 %v43
    %v76 = vunpack.c.l.b16 %v44
    %v77 = vunpack.c.l.b16 %v45
    %v78 = vunpack.c.l.b16 %v46
    %v79 = vunpack.c.l.b16 %v47
    %v80 = vpack.c.b16 %v65, %v64
    %v81 = vpack.c.b16 %v67, %v66
    %v82 = vpack.c.b16 %v69, %v68
    %v83 = vpack.c.b16 %v71, %v70
    %v84 = vpack.c.b16 %v73, %v72
    %v85 = vpack.c.b16 %v75, %v74
    %v86 = vpack.c.b16 %v77, %v76
    %v87 = vpack.c.b16 %v79, %v78
    %96 = vmatprep.subr.bf16.mxu0 0
    %97 = vmatpush1.bf16.msra.mxu0 1065369472
    %98 = vmatprep.subr.bf16.mxu0 0
    %99 = vmatpush1.bf16.msra.mxu0 1065369472
    %100 = vmatprep.subr.bf16.mxu0 0
    %101 = vmatpush1.bf16.msra.mxu0 1065369472
    %102 = vmatprep.subr.bf16.mxu0 0
    %103 = vmatpush1.bf16.msra.mxu0 1065369472
    %104 = vmatprep.subr.bf16.mxu0 0
    %105 = vmatpush1.bf16.msra.mxu0 1065369472
    %106 = vmatprep.subr.bf16.mxu0 0
    %107 = vmatpush1.bf16.msra.mxu0 1065369472
    %108 = vmatprep.subr.bf16.mxu0 0
    %109 = vmatpush1.bf16.msra.mxu0 1065369472
    %110 = vmatprep.subr.bf16.mxu0 0
    %111 = vmatpush1.bf16.msra.mxu0 1065369472
    %112 = vmatprep.subr.bf16.mxu0 0
    %113 = vmatpush1.bf16.msra.mxu0 0
    %114 = vmatprep.subr.bf16.mxu0 0
    %115 = vmatpush1.bf16.msra.mxu0 0
    %116 = vmatprep.subr.bf16.mxu0 0
    %117 = vmatpush1.bf16.msra.mxu0 0
    %118 = vmatprep.subr.bf16.mxu0 0
    %119 = vmatpush1.bf16.msra.mxu0 0
    %120 = vmatprep.subr.bf16.mxu0 0
    %121 = vmatpush1.bf16.msra.mxu0 0
    %122 = vmatprep.subr.bf16.mxu0 0
    %123 = vmatpush1.bf16.msra.mxu0 0
    %124 = vmatprep.subr.bf16.mxu0 0
    %125 = vmatpush1.bf16.msra.mxu0 0
    %126 = vmatprep.subr.bf16.mxu0 0
    %127 = vmatpush1.bf16.msra.mxu0 0
    %128 = vmatprep.mubr.bf16.mxu0 0
    %129 = vmatmul.mubr.bf16.gmra.mrb[0].mxu0 %v80
    %v130 = vpop.f32.mrb[0].mxu0
    %v131 = vadd.f32 0.0, %v130
    %v132 = vpop.f32.mrb[0].mxu0
    %v133 = vpop.f32.mrb[0].mxu0
    %v134 = vadd.f32 0.0, %v133
    %v135 = vpop.f32.mrb[0].mxu0
    %136 = vmatprep.mubr.bf16.mxu0 0
    %137 = vmatmul.mubr.bf16.gmra.mrb[0].mxu0 %v81
    %v138 = vpop.f32.mrb[0].mxu0
    %v139 = vadd.f32 0.0, %v138
    %v140 = vpop.f32.mrb[0].mxu0
    %v141 = vpop.f32.mrb[0].mxu0
    %v142 = vadd.f32 0.0, %v141
    %v143 = vpop.f32.mrb[0].mxu0
    %144 = vmatprep.mubr.bf16.mxu0 0
    %145 = vmatmul.mubr.bf16.gmra.mrb[0].mxu0 %v82
    %v146 = vpop.f32.mrb[0].mxu0
    %v147 = vadd.f32 0.0, %v146
    %v148 = vpop.f32.mrb[0].mxu0
    %v149 = vpop.f32.mrb[0].mxu0
    %v150 = vadd.f32 0.0, %v149
    %v151 = vpop.f32.mrb[0].mxu0
    %152 = vmatprep.mubr.bf16.mxu0 0
    %153 = vmatmul.mubr.bf16.gmra.mrb[0].mxu0 %v83
    %v154 = vpop.f32.mrb[0].mxu0
    %v155 = vadd.f32 0.0, %v154
    %v156 = vpop.f32.mrb[0].mxu0
    %v157 = vpop.f32.mrb[0].mxu0
    %v158 = vadd.f32 0.0, %v157
    %v159 = vpop.f32.mrb[0].mxu0
    %160 = vmatprep.mubr.bf16.mxu0 0
    %161 = vmatmul.mubr.bf16.gmra.mrb[0].mxu0 %v84
    %v162 = vpop.f32.mrb[0].mxu0
    %v163 = vadd.f32 0.0, %v162
    %v164 = vpop.f32.mrb[0].mxu0
    %v165 = vpop.f32.mrb[0].mxu0
    %v166 = vadd.f32 0.0, %v165
    %v167 = vpop.f32.mrb[0].mxu0
    %168 = vmatprep.mubr.bf16.mxu0 0
    %169 = vmatmul.mubr.bf16.gmra.mrb[0].mxu0 %v85
    %v170 = vpop.f32.mrb[0].mxu0
    %v171 = vadd.f32 0.0, %v170
    %v172 = vpop.f32.mrb[0].mxu0
    %v173 = vpop.f32.mrb[0].mxu0
    %v174 = vadd.f32 0.0, %v173
    %v175 = vpop.f32.mrb[0].mxu0
    %176 = vmatprep.mubr.bf16.mxu0 0
    %177 = vmatmul.mubr.bf16.gmra.mrb[0].mxu0 %v86
    %v178 = vpop.f32.mrb[0].mxu0
    %v179 = vadd.f32 0.0, %v178
    %v180 = vpop.f32.mrb[0].mxu0
    %v181 = vpop.f32.mrb[0].mxu0
    %v182 = vadd.f32 0.0, %v181
    %v183 = vpop.f32.mrb[0].mxu0
    %184 = vmatprep.mubr.bf16.mxu0 0
    %185 = vmatmul.mubr.bf16.gmra.mrb[0].mxu0 %v87
    %v186 = vpop.f32.mrb[0].mxu0
    %v187 = vadd.f32 0.0, %v186
    %v188 = vpop.f32.mrb[0].mxu0
    %v189 = vpop.f32.mrb[0].mxu0
    %v190 = vadd.f32 0.0, %v189
    %v191 = vpop.f32.mrb[0].mxu0
    %192 = vdwg.mxu0
    %193 = vmatprep.subr.bf16.mxu0 0
    %194 = vmatpush1.bf16.msra.mxu0 %v80
    %195 = vmatprep.subr.bf16.mxu0 0
    %196 = vmatpush1.bf16.msra.mxu0 %v81
    %197 = vmatprep.subr.bf16.mxu0 0
    %198 = vmatpush1.bf16.msra.mxu0 %v82
    %199 = vmatprep.subr.bf16.mxu0 0
    %200 = vmatpush1.bf16.msra.mxu0 %v83
    %201 = vmatprep.subr.bf16.mxu0 0
    %202 = vmatpush1.bf16.msra.mxu0 %v84
    %203 = vmatprep.subr.bf16.mxu0 0
    %204 = vmatpush1.bf16.msra.mxu0 %v85
    %205 = vmatprep.subr.bf16.mxu0 0
    %206 = vmatpush1.bf16.msra.mxu0 %v86
    %207 = vmatprep.subr.bf16.mxu0 0
    %208 = vmatpush1.bf16.msra.mxu0 %v87
    %209 = vmatprep.subr.bf16.mxu0 0
    %210 = vmatpush1.bf16.msra.mxu0 0
    %211 = vmatprep.subr.bf16.mxu0 0
    %212 = vmatpush1.bf16.msra.mxu0 0
    %213 = vmatprep.subr.bf16.mxu0 0
    %214 = vmatpush1.bf16.msra.mxu0 0
    %215 = vmatprep.subr.bf16.mxu0 0
    %216 = vmatpush1.bf16.msra.mxu0 0
    %217 = vmatprep.subr.bf16.mxu0 0
    %218 = vmatpush1.bf16.msra.mxu0 0
    %219 = vmatprep.subr.bf16.mxu0 0
    %220 = vmatpush1.bf16.msra.mxu0 0
    %221 = vmatprep.subr.bf16.mxu0 0
    %222 = vmatpush1.bf16.msra.mxu0 0
    %223 = vmatprep.subr.bf16.mxu0 0
    %224 = vmatpush1.bf16.msra.mxu0 0
    %225 = vmatprep.mubr.bf16.mxu0 0
    %226 = vmatmul.mubr.bf16.gmra.mrb[0].mxu0 1065369472
    %v227 = vpop.f32.mrb[0].mxu0
    %v228 = vadd.f32 0.0, %v227
    %v229 = vpop.f32.mrb[0].mxu0
    %v230 = vpop.f32.mrb[0].mxu0
    %v231 = vpop.f32.mrb[0].mxu0
    %232 = vdwg.mxu0
    %vm233 = vcmp.gt.f32.partialorder %v131, 0.0
    %vm234 = vcmp.gt.f32.partialorder %v134, 0.0
    %vm235 = vcmp.gt.f32.partialorder %v139, 0.0
    %vm236 = vcmp.gt.f32.partialorder %v142, 0.0
    %vm237 = vcmp.gt.f32.partialorder %v147, 0.0
    %vm238 = vcmp.gt.f32.partialorder %v150, 0.0
    %vm239 = vcmp.gt.f32.partialorder %v155, 0.0
    %vm240 = vcmp.gt.f32.partialorder %v158, 0.0
    %vm241 = vcmp.gt.f32.partialorder %v163, 0.0
    %vm242 = vcmp.gt.f32.partialorder %v166, 0.0
    %vm243 = vcmp.gt.f32.partialorder %v171, 0.0
    %vm244 = vcmp.gt.f32.partialorder %v174, 0.0
    %vm245 = vcmp.gt.f32.partialorder %v179, 0.0
    %vm246 = vcmp.gt.f32.partialorder %v182, 0.0
    %vm247 = vcmp.gt.f32.partialorder %v187, 0.0
    %vm248 = vcmp.gt.f32.partialorder %v190, 0.0
    %v249 = vmax.f32 %v131, 1.0
    %v250 = vmax.f32 %v134, 1.0
    %v251 = vmax.f32 %v139, 1.0
    %v252 = vmax.f32 %v142, 1.0
    %v253 = vmax.f32 %v147, 1.0
    %v254 = vmax.f32 %v150, 1.0
    %v255 = vmax.f32 %v155, 1.0
    %v256 = vmax.f32 %v158, 1.0
    %v257 = vmax.f32 %v163, 1.0
    %v258 = vmax.f32 %v166, 1.0
    %v259 = vmax.f32 %v171, 1.0
    %v260 = vmax.f32 %v174, 1.0
    %v261 = vmax.f32 %v179, 1.0
    %v262 = vmax.f32 %v182, 1.0
    %v263 = vmax.f32 %v187, 1.0
    %v264 = vmax.f32 %v190, 1.0
    %v265 = vrsqrt.pop %v249
    %v266 = vrsqrt.pop %v250
    %v267 = vrsqrt.pop %v251
    %v268 = vrsqrt.pop %v252
    %v269 = vrsqrt.pop %v253
    %v270 = vrsqrt.pop %v254
    %v271 = vrsqrt.pop %v255
    %v272 = vrsqrt.pop %v256
    %v273 = vrsqrt.pop %v257
    %v274 = vrsqrt.pop %v258
    %v275 = vrsqrt.pop %v259
    %v276 = vrsqrt.pop %v260
    %v277 = vrsqrt.pop %v261
    %v278 = vrsqrt.pop %v262
    %v279 = vrsqrt.pop %v263
    %v280 = vrsqrt.pop %v264
    %v281 = vsel %vm233, %v265, 0.0
    %v282 = vsel %vm234, %v266, 0.0
    %v283 = vsel %vm235, %v267, 0.0
    %v284 = vsel %vm236, %v268, 0.0
    %v285 = vsel %vm237, %v269, 0.0
    %v286 = vsel %vm238, %v270, 0.0
    %v287 = vsel %vm239, %v271, 0.0
    %v288 = vsel %vm240, %v272, 0.0
    %v289 = vsel %vm241, %v273, 0.0
    %v290 = vsel %vm242, %v274, 0.0
    %v291 = vsel %vm243, %v275, 0.0
    %v292 = vsel %vm244, %v276, 0.0
    %v293 = vsel %vm245, %v277, 0.0
    %v294 = vsel %vm246, %v278, 0.0
    %v295 = vsel %vm247, %v279, 0.0
    %v296 = vsel %vm248, %v280, 0.0
    %vm297 = vcmp.gt.f32.partialorder %v228, 0.0
    %v298 = vmax.f32 %v228, 1.0
    %v299 = vrsqrt.pop %v298
    %v300 = vsel %vm297, %v299, 0.0
    %301 = vxpose.xlu0.b32.start [1/16] %v300, 128
    %302 = vxpose.xlu0.b32.cont [2/16] 0.0, 128
    %303 = vxpose.xlu0.b32.cont [3/16] 0.0, 128
    %304 = vxpose.xlu0.b32.cont [4/16] 0.0, 128
    %305 = vxpose.xlu0.b32.cont [5/16] 0.0, 128
    %306 = vxpose.xlu0.b32.cont [6/16] 0.0, 128
    %307 = vxpose.xlu0.b32.cont [7/16] 0.0, 128
    %308 = vxpose.xlu0.b32.cont [8/16] 0.0, 128
    %309 = vxpose.xlu0.b32.cont [9/16] 0.0, 128
    %310 = vxpose.xlu0.b32.cont [10/16] 0.0, 128
    %311 = vxpose.xlu0.b32.cont [11/16] 0.0, 128
    %312 = vxpose.xlu0.b32.cont [12/16] 0.0, 128
    %313 = vxpose.xlu0.b32.cont [13/16] 0.0, 128
    %314 = vxpose.xlu0.b32.cont [14/16] 0.0, 128
    %315 = vxpose.xlu0.b32.cont [15/16] 0.0, 128
    %316 = vxpose.xlu0.b32.end [16/16] 0.0, 128
    %v317 = vpop.trf.xlu0
    %v318 = vpop.trf.xlu0
    %v319 = vpop.trf.xlu0
    %v320 = vpop.trf.xlu0
    %v321 = vpop.trf.xlu0
    %v322 = vpop.trf.xlu0
    %v323 = vpop.trf.xlu0
    %v324 = vpop.trf.xlu0
    %v325 = vpop.trf.xlu0
    %v326 = vpop.trf.xlu0
    %v327 = vpop.trf.xlu0
    %v328 = vpop.trf.xlu0
    %v329 = vpop.trf.xlu0
    %v330 = vpop.trf.xlu0
    %v331 = vpop.trf.xlu0
    %v332 = vpop.trf.xlu0
    %v333 = vld [vmem:[%s1] sm:$0xf]
    %v334 = vld [vmem:[%s1 + $0x4] sm:$0xf]
    %v335 = vld [vmem:[%s1 + $0x8] sm:$0xf]
    %v336 = vld [vmem:[%s1 + $0xc] sm:$0xf]
    %v337 = vld [vmem:[%s1 + $0x10] sm:$0xf]
    %v338 = vld [vmem:[%s1 + $0x14] sm:$0xf]
    %v339 = vld [vmem:[%s1 + $0x18] sm:$0xf]
    %v340 = vld [vmem:[%s1 + $0x1c] sm:$0xf]
    %v341 = vld [vmem:[%s1 + $0x20] sm:$0xf]
    %v342 = vld [vmem:[%s1 + $0x24] sm:$0xf]
    %v343 = vld [vmem:[%s1 + $0x28] sm:$0xf]
    %v344 = vld [vmem:[%s1 + $0x2c] sm:$0xf]
    %v345 = vld [vmem:[%s1 + $0x30] sm:$0xf]
    %v346 = vld [vmem:[%s1 + $0x34] sm:$0xf]
    %v347 = vld [vmem:[%s1 + $0x38] sm:$0xf]
    %v348 = vld [vmem:[%s1 + $0x3c] sm:$0xf]
    %v349 = vld [vmem:[%s2] sm:$0xff]
    %v350 = vld [vmem:[%s2 + $0x8] sm:$0xff]
    %v351 = vld [vmem:[%s2 + $0x10] sm:$0xff]
    %v352 = vld [vmem:[%s2 + $0x18] sm:$0xff]
    %v353 = vld [vmem:[%s2 + $0x20] sm:$0xff]
    %v354 = vld [vmem:[%s2 + $0x28] sm:$0xff]
    %v355 = vld [vmem:[%s2 + $0x30] sm:$0xff]
    %v356 = vld [vmem:[%s2 + $0x38] sm:$0xff]
    %v357 = vld [vmem:[%s2 + $0x40] sm:$0xff]
    %v358 = vld [vmem:[%s2 + $0x48] sm:$0xff]
    %v359 = vld [vmem:[%s2 + $0x50] sm:$0xff]
    %v360 = vld [vmem:[%s2 + $0x58] sm:$0xff]
    %v361 = vld [vmem:[%s2 + $0x60] sm:$0xff]
    %v362 = vld [vmem:[%s2 + $0x68] sm:$0xff]
    %v363 = vld [vmem:[%s2 + $0x70] sm:$0xff]
    %v364 = vld [vmem:[%s2 + $0x78] sm:$0xff]
    %v365 = vld [vmem:[%s3] sm:$0x1]
    %v366 = vunpack.c.l.bf16 %v333
    %v367 = vunpack.c.l.bf16 %v334
    %v368 = vunpack.c.l.bf16 %v335
    %v369 = vunpack.c.l.bf16 %v336
    %v370 = vunpack.c.l.bf16 %v337
    %v371 = vunpack.c.l.bf16 %v338
    %v372 = vunpack.c.l.bf16 %v339
    %v373 = vunpack.c.l.bf16 %v340
    %v374 = vunpack.c.l.bf16 %v341
    %v375 = vunpack.c.l.bf16 %v342
    %v376 = vunpack.c.l.bf16 %v343
    %v377 = vunpack.c.l.bf16 %v344
    %v378 = vunpack.c.l.bf16 %v345
    %v379 = vunpack.c.l.bf16 %v346
    %v380 = vunpack.c.l.bf16 %v347
    %v381 = vunpack.c.l.bf16 %v348
    %383 = vset.pattern.permute.xlu0 0
    %384 = vperm.xlu0 %383, %v317
    %v385 = vpop.permute.xlu0 %384
    %388 = vset.pattern.permute.xlu0 0
    %389 = vperm.xlu0 %388, %v318
    %v390 = vpop.permute.xlu0 %389
    %393 = vset.pattern.permute.xlu0 0
    %394 = vperm.xlu0 %393, %v319
    %v395 = vpop.permute.xlu0 %394
    %398 = vset.pattern.permute.xlu0 0
    %399 = vperm.xlu0 %398, %v320
    %v400 = vpop.permute.xlu0 %399
    %403 = vset.pattern.permute.xlu0 0
    %404 = vperm.xlu0 %403, %v321
    %v405 = vpop.permute.xlu0 %404
    %408 = vset.pattern.permute.xlu0 0
    %409 = vperm.xlu0 %408, %v322
    %v410 = vpop.permute.xlu0 %409
    %413 = vset.pattern.permute.xlu0 0
    %414 = vperm.xlu0 %413, %v323
    %v415 = vpop.permute.xlu0 %414
    %418 = vset.pattern.permute.xlu0 0
    %419 = vperm.xlu0 %418, %v324
    %v420 = vpop.permute.xlu0 %419
    %423 = vset.pattern.permute.xlu0 0
    %424 = vperm.xlu0 %423, %v325
    %v425 = vpop.permute.xlu0 %424
    %428 = vset.pattern.permute.xlu0 0
    %429 = vperm.xlu0 %428, %v326
    %v430 = vpop.permute.xlu0 %429
    %433 = vset.pattern.permute.xlu0 0
    %434 = vperm.xlu0 %433, %v327
    %v435 = vpop.permute.xlu0 %434
    %438 = vset.pattern.permute.xlu0 0
    %439 = vperm.xlu0 %438, %v328
    %v440 = vpop.permute.xlu0 %439
    %443 = vset.pattern.permute.xlu0 0
    %444 = vperm.xlu0 %443, %v329
    %v445 = vpop.permute.xlu0 %444
    %448 = vset.pattern.permute.xlu0 0
    %449 = vperm.xlu0 %448, %v330
    %v450 = vpop.permute.xlu0 %449
    %453 = vset.pattern.permute.xlu0 0
    %454 = vperm.xlu0 %453, %v331
    %v455 = vpop.permute.xlu0 %454
    %458 = vset.pattern.permute.xlu0 0
    %459 = vperm.xlu0 %458, %v332
    %v460 = vpop.permute.xlu0 %459
    %v462 = vmul.f32 %v366, %v385
    %v463 = vmul.f32 %v367, %v390
    %v464 = vmul.f32 %v368, %v395
    %v465 = vmul.f32 %v369, %v400
    %v466 = vmul.f32 %v370, %v405
    %v467 = vmul.f32 %v371, %v410
    %v468 = vmul.f32 %v372, %v415
    %v469 = vmul.f32 %v373, %v420
    %v470 = vmul.f32 %v374, %v425
    %v471 = vmul.f32 %v375, %v430
    %v472 = vmul.f32 %v376, %v435
    %v473 = vmul.f32 %v377, %v440
    %v474 = vmul.f32 %v378, %v445
    %v475 = vmul.f32 %v379, %v450
    %v476 = vmul.f32 %v380, %v455
    %v477 = vmul.f32 %v381, %v460
    %v478 = vpack.c.bf16 %v463, %v462
    %v479 = vpack.c.bf16 %v465, %v464
    %v480 = vpack.c.bf16 %v467, %v466
    %v481 = vpack.c.bf16 %v469, %v468
    %v482 = vpack.c.bf16 %v471, %v470
    %v483 = vpack.c.bf16 %v473, %v472
    %v484 = vpack.c.bf16 %v475, %v474
    %v485 = vpack.c.bf16 %v477, %v476
    %486 = vmatprep.subr.bf16.mxu0 0
    %487 = vmatpush1.bf16.msra.mxu0 %v478
    %488 = vmatprep.subr.bf16.mxu0 0
    %489 = vmatpush1.bf16.msra.mxu0 %v479
    %490 = vmatprep.subr.bf16.mxu0 0
    %491 = vmatpush1.bf16.msra.mxu0 %v480
    %492 = vmatprep.subr.bf16.mxu0 0
    %493 = vmatpush1.bf16.msra.mxu0 %v481
    %494 = vmatprep.subr.bf16.mxu0 0
    %495 = vmatpush1.bf16.msra.mxu0 %v482
    %496 = vmatprep.subr.bf16.mxu0 0
    %497 = vmatpush1.bf16.msra.mxu0 %v483
    %498 = vmatprep.subr.bf16.mxu0 0
    %499 = vmatpush1.bf16.msra.mxu0 %v484
    %500 = vmatprep.subr.bf16.mxu0 0
    %501 = vmatpush1.bf16.msra.mxu0 %v485
    %502 = vmatprep.subr.bf16.mxu0 0
    %503 = vmatpush1.bf16.msra.mxu0 0
    %504 = vmatprep.subr.bf16.mxu0 0
    %505 = vmatpush1.bf16.msra.mxu0 0
    %506 = vmatprep.subr.bf16.mxu0 0
    %507 = vmatpush1.bf16.msra.mxu0 0
    %508 = vmatprep.subr.bf16.mxu0 0
    %509 = vmatpush1.bf16.msra.mxu0 0
    %510 = vmatprep.subr.bf16.mxu0 0
    %511 = vmatpush1.bf16.msra.mxu0 0
    %512 = vmatprep.subr.bf16.mxu0 0
    %513 = vmatpush1.bf16.msra.mxu0 0
    %514 = vmatprep.subr.bf16.mxu0 0
    %515 = vmatpush1.bf16.msra.mxu0 0
    %516 = vmatprep.subr.bf16.mxu0 0
    %517 = vmatpush1.bf16.msra.mxu0 0
    %518 = vmatprep.mubr.bf16.mxu0 0
    %519 = vmatmul.mubr.bf16.gmra.mrb[0].mxu0 %v80
    %v520 = vpop.f32.mrb[0].mxu0
    %v521 = vadd.f32 0.0, %v520
    %v522 = vpop.f32.mrb[0].mxu0
    %v523 = vpop.f32.mrb[0].mxu0
    %v524 = vadd.f32 0.0, %v523
    %v525 = vpop.f32.mrb[0].mxu0
    %526 = vmatprep.mubr.bf16.mxu0 0
    %527 = vmatmul.mubr.bf16.gmra.mrb[0].mxu0 %v81
    %v528 = vpop.f32.mrb[0].mxu0
    %v529 = vadd.f32 0.0, %v528
    %v530 = vpop.f32.mrb[0].mxu0
    %v531 = vpop.f32.mrb[0].mxu0
    %v532 = vadd.f32 0.0, %v531
    %v533 = vpop.f32.mrb[0].mxu0
    %534 = vmatprep.mubr.bf16.mxu0 0
    %535 = vmatmul.mubr.bf16.gmra.mrb[0].mxu0 %v82
    %v536 = vpop.f32.mrb[0].mxu0
    %v537 = vadd.f32 0.0, %v536
    %v538 = vpop.f32.mrb[0].mxu0
    %v539 = vpop.f32.mrb[0].mxu0
    %v540 = vadd.f32 0.0, %v539
    %v541 = vpop.f32.mrb[0].mxu0
    %542 = vmatprep.mubr.bf16.mxu0 0
    %543 = vmatmul.mubr.bf16.gmra.mrb[0].mxu0 %v83
    %v544 = vpop.f32.mrb[0].mxu0
    %v545 = vadd.f32 0.0, %v544
    %v546 = vpop.f32.mrb[0].mxu0
    %v547 = vpop.f32.mrb[0].mxu0
    %v548 = vadd.f32 0.0, %v547
    %v549 = vpop.f32.mrb[0].mxu0
    %550 = vmatprep.mubr.bf16.mxu0 0
    %551 = vmatmul.mubr.bf16.gmra.mrb[0].mxu0 %v84
    %v552 = vpop.f32.mrb[0].mxu0
    %v553 = vadd.f32 0.0, %v552
    %v554 = vpop.f32.mrb[0].mxu0
    %v555 = vpop.f32.mrb[0].mxu0
    %v556 = vadd.f32 0.0, %v555
    %v557 = vpop.f32.mrb[0].mxu0
    %558 = vmatprep.mubr.bf16.mxu0 0
    %559 = vmatmul.mubr.bf16.gmra.mrb[0].mxu0 %v85
    %v560 = vpop.f32.mrb[0].mxu0
    %v561 = vadd.f32 0.0, %v560
    %v562 = vpop.f32.mrb[0].mxu0
    %v563 = vpop.f32.mrb[0].mxu0
    %v564 = vadd.f32 0.0, %v563
    %v565 = vpop.f32.mrb[0].mxu0
    %566 = vmatprep.mubr.bf16.mxu0 0
    %567 = vmatmul.mubr.bf16.gmra.mrb[0].mxu0 %v86
    %v568 = vpop.f32.mrb[0].mxu0
    %v569 = vadd.f32 0.0, %v568
    %v570 = vpop.f32.mrb[0].mxu0
    %v571 = vpop.f32.mrb[0].mxu0
    %v572 = vadd.f32 0.0, %v571
    %v573 = vpop.f32.mrb[0].mxu0
    %574 = vmatprep.mubr.bf16.mxu0 0
    %575 = vmatmul.mubr.bf16.gmra.mrb[0].mxu0 %v87
    %v576 = vpop.f32.mrb[0].mxu0
    %v577 = vadd.f32 0.0, %v576
    %v578 = vpop.f32.mrb[0].mxu0
    %v579 = vpop.f32.mrb[0].mxu0
    %v580 = vadd.f32 0.0, %v579
    %v581 = vpop.f32.mrb[0].mxu0
    %582 = vdwg.mxu0
    %584 = vset.pattern.permute.xlu0 0
    %585 = vperm.xlu0 %584, %v281
    %v586 = vpop.permute.xlu0 %585
    %589 = vset.pattern.permute.xlu0 0
    %590 = vperm.xlu0 %589, %v282
    %v591 = vpop.permute.xlu0 %590
    %594 = vset.pattern.permute.xlu0 0
    %595 = vperm.xlu0 %594, %v283
    %v596 = vpop.permute.xlu0 %595
    %599 = vset.pattern.permute.xlu0 0
    %600 = vperm.xlu0 %599, %v284
    %v601 = vpop.permute.xlu0 %600
    %604 = vset.pattern.permute.xlu0 0
    %605 = vperm.xlu0 %604, %v285
    %v606 = vpop.permute.xlu0 %605
    %609 = vset.pattern.permute.xlu0 0
    %610 = vperm.xlu0 %609, %v286
    %v611 = vpop.permute.xlu0 %610
    %614 = vset.pattern.permute.xlu0 0
    %615 = vperm.xlu0 %614, %v287
    %v616 = vpop.permute.xlu0 %615
    %619 = vset.pattern.permute.xlu0 0
    %620 = vperm.xlu0 %619, %v288
    %v621 = vpop.permute.xlu0 %620
    %624 = vset.pattern.permute.xlu0 0
    %625 = vperm.xlu0 %624, %v289
    %v626 = vpop.permute.xlu0 %625
    %629 = vset.pattern.permute.xlu0 0
    %630 = vperm.xlu0 %629, %v290
    %v631 = vpop.permute.xlu0 %630
    %634 = vset.pattern.permute.xlu0 0
    %635 = vperm.xlu0 %634, %v291
    %v636 = vpop.permute.xlu0 %635
    %639 = vset.pattern.permute.xlu0 0
    %640 = vperm.xlu0 %639, %v292
    %v641 = vpop.permute.xlu0 %640
    %644 = vset.pattern.permute.xlu0 0
    %645 = vperm.xlu0 %644, %v293
    %v646 = vpop.permute.xlu0 %645
    %649 = vset.pattern.permute.xlu0 0
    %650 = vperm.xlu0 %649, %v294
    %v651 = vpop.permute.xlu0 %650
    %654 = vset.pattern.permute.xlu0 0
    %655 = vperm.xlu0 %654, %v295
    %v656 = vpop.permute.xlu0 %655
    %659 = vset.pattern.permute.xlu0 0
    %660 = vperm.xlu0 %659, %v296
    %v661 = vpop.permute.xlu0 %660
    %v663 = vmul.f32 %v521, %v586
    %v664 = vmul.f32 %v524, %v591
    %v665 = vmul.f32 %v529, %v596
    %v666 = vmul.f32 %v532, %v601
    %v667 = vmul.f32 %v537, %v606
    %v668 = vmul.f32 %v540, %v611
    %v669 = vmul.f32 %v545, %v616
    %v670 = vmul.f32 %v548, %v621
    %v671 = vmul.f32 %v553, %v626
    %v672 = vmul.f32 %v556, %v631
    %v673 = vmul.f32 %v561, %v636
    %v674 = vmul.f32 %v564, %v641
    %v675 = vmul.f32 %v569, %v646
    %v676 = vmul.f32 %v572, %v651
    %v677 = vmul.f32 %v577, %v656
    %v678 = vmul.f32 %v580, %v661
    %v680 = vlaneseq
    %v681 = vshrl.u32 %v680, 7
    %v682 = vsub.s32 0, %v681
    %v683 = vrot.slane %v365, %v682
    %685 = vmatprep.subr.mxu0 0.0
    %686 = vmatpush1.msra.mxu0 %v349
    %687 = vmatprep.subr.mxu0 0.0
    %688 = vmatpush1.msra.mxu0 %v350
    %689 = vmatprep.subr.mxu0 0.0
    %690 = vmatpush1.msra.mxu0 %v351
    %691 = vmatprep.subr.mxu0 0.0
    %692 = vmatpush1.msra.mxu0 %v352
    %693 = vmatprep.subr.mxu0 0.0
    %694 = vmatpush1.msra.mxu0 %v353
    %695 = vmatprep.subr.mxu0 0.0
    %696 = vmatpush1.msra.mxu0 %v354
    %697 = vmatprep.subr.mxu0 0.0
    %698 = vmatpush1.msra.mxu0 %v355
    %699 = vmatprep.subr.mxu0 0.0
    %700 = vmatpush1.msra.mxu0 %v356
    %701 = vmatprep.subr.mxu0 0.0
    %702 = vmatpush1.msra.mxu0 %v357
    %703 = vmatprep.subr.mxu0 0.0
    %704 = vmatpush1.msra.mxu0 %v358
    %705 = vmatprep.subr.mxu0 0.0
    %706 = vmatpush1.msra.mxu0 %v359
    %707 = vmatprep.subr.mxu0 0.0
    %708 = vmatpush1.msra.mxu0 %v360
    %709 = vmatprep.subr.mxu0 0.0
    %710 = vmatpush1.msra.mxu0 %v361
    %711 = vmatprep.subr.mxu0 0.0
    %712 = vmatpush1.msra.mxu0 %v362
    %713 = vmatprep.subr.mxu0 0.0
    %714 = vmatpush1.msra.mxu0 %v363
    %715 = vmatprep.subr.mxu0 0.0
    %716 = vmatpush1.msra.mxu0 %v364
    %717 = vmatprep.subr.mxu0 0.0
    %718 = vmatpush1.msra.mxu0 0.0
    %719 = vmatprep.subr.mxu0 0.0
    %720 = vmatpush1.msra.mxu0 0.0
    %721 = vmatprep.subr.mxu0 0.0
    %722 = vmatpush1.msra.mxu0 0.0
    %723 = vmatprep.subr.mxu0 0.0
    %724 = vmatpush1.msra.mxu0 0.0
    %725 = vmatprep.subr.mxu0 0.0
    %726 = vmatpush1.msra.mxu0 0.0
    %727 = vmatprep.subr.mxu0 0.0
    %728 = vmatpush1.msra.mxu0 0.0
    %729 = vmatprep.subr.mxu0 0.0
    %730 = vmatpush1.msra.mxu0 0.0
    %731 = vmatprep.subr.mxu0 0.0
    %732 = vmatpush1.msra.mxu0 0.0
    %733 = vmatprep.subr.mxu0 0.0
    %734 = vmatpush1.msra.mxu0 0.0
    %735 = vmatprep.subr.mxu0 0.0
    %736 = vmatpush1.msra.mxu0 0.0
    %737 = vmatprep.subr.mxu0 0.0
    %738 = vmatpush1.msra.mxu0 0.0
    %739 = vmatprep.subr.mxu0 0.0
    %740 = vmatpush1.msra.mxu0 0.0
    %741 = vmatprep.subr.mxu0 0.0
    %742 = vmatpush1.msra.mxu0 0.0
    %743 = vmatprep.subr.mxu0 0.0
    %744 = vmatpush1.msra.mxu0 0.0
    %745 = vmatprep.subr.mxu0 0.0
    %746 = vmatpush1.msra.mxu0 0.0
    %747 = vmatprep.subr.mxu0 0.0
    %748 = vmatpush1.msra.mxu0 0.0
    %749 = vmatprep.mubr.f32.mxu0 0.0
    %750 = vmatmul.mubr.f32.gmra.mrb[0].mxu0 %v663
    %v751 = vpop.f32.mrb[0].mxu0
    %v752 = vadd.f32 %v683, %v751
    %v753 = vpop.f32.mrb[0].mxu0
    %754 = vmatprep.mubr.f32.mxu0 0.0
    %755 = vmatmul.mubr.f32.gmra.mrb[0].mxu0 %v664
    %v756 = vpop.f32.mrb[0].mxu0
    %v757 = vadd.f32 %v683, %v756
    %v758 = vpop.f32.mrb[0].mxu0
    %759 = vmatprep.mubr.f32.mxu0 0.0
    %760 = vmatmul.mubr.f32.gmra.mrb[0].mxu0 %v665
    %v761 = vpop.f32.mrb[0].mxu0
    %v762 = vadd.f32 %v683, %v761
    %v763 = vpop.f32.mrb[0].mxu0
    %764 = vmatprep.mubr.f32.mxu0 0.0
    %765 = vmatmul.mubr.f32.gmra.mrb[0].mxu0 %v666
    %v766 = vpop.f32.mrb[0].mxu0
    %v767 = vadd.f32 %v683, %v766
    %v768 = vpop.f32.mrb[0].mxu0
    %769 = vmatprep.mubr.f32.mxu0 0.0
    %770 = vmatmul.mubr.f32.gmra.mrb[0].mxu0 %v667
    %v771 = vpop.f32.mrb[0].mxu0
    %v772 = vadd.f32 %v683, %v771
    %v773 = vpop.f32.mrb[0].mxu0
    %774 = vmatprep.mubr.f32.mxu0 0.0
    %775 = vmatmul.mubr.f32.gmra.mrb[0].mxu0 %v668
    %v776 = vpop.f32.mrb[0].mxu0
    %v777 = vadd.f32 %v683, %v776
    %v778 = vpop.f32.mrb[0].mxu0
    %779 = vmatprep.mubr.f32.mxu0 0.0
    %780 = vmatmul.mubr.f32.gmra.mrb[0].mxu0 %v669
    %v781 = vpop.f32.mrb[0].mxu0
    %v782 = vadd.f32 %v683, %v781
    %v783 = vpop.f32.mrb[0].mxu0
    %784 = vmatprep.mubr.f32.mxu0 0.0
    %785 = vmatmul.mubr.f32.gmra.mrb[0].mxu0 %v670
    %v786 = vpop.f32.mrb[0].mxu0
    %v787 = vadd.f32 %v683, %v786
    %v788 = vpop.f32.mrb[0].mxu0
    %789 = vmatprep.mubr.f32.mxu0 0.0
    %790 = vmatmul.mubr.f32.gmra.mrb[0].mxu0 %v671
    %v791 = vpop.f32.mrb[0].mxu0
    %v792 = vadd.f32 %v683, %v791
    %v793 = vpop.f32.mrb[0].mxu0
    %794 = vmatprep.mubr.f32.mxu0 0.0
    %795 = vmatmul.mubr.f32.gmra.mrb[0].mxu0 %v672
    %v796 = vpop.f32.mrb[0].mxu0
    %v797 = vadd.f32 %v683, %v796
    %v798 = vpop.f32.mrb[0].mxu0
    %799 = vmatprep.mubr.f32.mxu0 0.0
    %800 = vmatmul.mubr.f32.gmra.mrb[0].mxu0 %v673
    %v801 = vpop.f32.mrb[0].mxu0
    %v802 = vadd.f32 %v683, %v801
    %v803 = vpop.f32.mrb[0].mxu0
    %804 = vmatprep.mubr.f32.mxu0 0.0
    %805 = vmatmul.mubr.f32.gmra.mrb[0].mxu0 %v674
    %v806 = vpop.f32.mrb[0].mxu0
    %v807 = vadd.f32 %v683, %v806
    %v808 = vpop.f32.mrb[0].mxu0
    %809 = vmatprep.mubr.f32.mxu0 0.0
    %810 = vmatmul.mubr.f32.gmra.mrb[0].mxu0 %v675
    %v811 = vpop.f32.mrb[0].mxu0
    %v812 = vadd.f32 %v683, %v811
    %v813 = vpop.f32.mrb[0].mxu0
    %814 = vmatprep.mubr.f32.mxu0 0.0
    %815 = vmatmul.mubr.f32.gmra.mrb[0].mxu0 %v676
    %v816 = vpop.f32.mrb[0].mxu0
    %v817 = vadd.f32 %v683, %v816
    %v818 = vpop.f32.mrb[0].mxu0
    %819 = vmatprep.mubr.f32.mxu0 0.0
    %820 = vmatmul.mubr.f32.gmra.mrb[0].mxu0 %v677
    %v821 = vpop.f32.mrb[0].mxu0
    %v822 = vadd.f32 %v683, %v821
    %v823 = vpop.f32.mrb[0].mxu0
    %824 = vmatprep.mubr.f32.mxu0 0.0
    %825 = vmatmul.mubr.f32.gmra.mrb[0].mxu0 %v678
    %v826 = vpop.f32.mrb[0].mxu0
    %v827 = vadd.f32 %v683, %v826
    %v828 = vpop.f32.mrb[0].mxu0
    %829 = vdwg.mxu0
    %v830 = vmax.f32 %v752, 0.0
    %v831 = vmax.f32 %v757, 0.0
    %v832 = vmax.f32 %v762, 0.0
    %v833 = vmax.f32 %v767, 0.0
    %v834 = vmax.f32 %v772, 0.0
    %v835 = vmax.f32 %v777, 0.0
    %v836 = vmax.f32 %v782, 0.0
    %v837 = vmax.f32 %v787, 0.0
    %v838 = vmax.f32 %v792, 0.0
    %v839 = vmax.f32 %v797, 0.0
    %v840 = vmax.f32 %v802, 0.0
    %v841 = vmax.f32 %v807, 0.0
    %v842 = vmax.f32 %v812, 0.0
    %v843 = vmax.f32 %v817, 0.0
    %v844 = vmax.f32 %v822, 0.0
    %v845 = vmax.f32 %v827, 0.0
    %v846 = vpack.c.bf16 %v831, %v830
    %v847 = vpack.c.bf16 %v833, %v832
    %v848 = vpack.c.bf16 %v835, %v834
    %v849 = vpack.c.bf16 %v837, %v836
    %v850 = vpack.c.bf16 %v839, %v838
    %v851 = vpack.c.bf16 %v841, %v840
    %v852 = vpack.c.bf16 %v843, %v842
    %v853 = vpack.c.bf16 %v845, %v844
    %v854 = vld [vmem:[%s4] sm:$0xff]
    %v855 = vld [vmem:[%s4 + $0x8] sm:$0xff]
    %v856 = vld [vmem:[%s4 + $0x10] sm:$0xff]
    %v857 = vld [vmem:[%s4 + $0x18] sm:$0xff]
    %v858 = vld [vmem:[%s4 + $0x20] sm:$0xff]
    %v859 = vld [vmem:[%s4 + $0x28] sm:$0xff]
    %v860 = vld [vmem:[%s4 + $0x30] sm:$0xff]
    %v861 = vld [vmem:[%s4 + $0x38] sm:$0xff]
    %v862 = vld [vmem:[%s4 + $0x40] sm:$0xff]
    %v863 = vld [vmem:[%s4 + $0x48] sm:$0xff]
    %v864 = vld [vmem:[%s4 + $0x50] sm:$0xff]
    %v865 = vld [vmem:[%s4 + $0x58] sm:$0xff]
    %v866 = vld [vmem:[%s4 + $0x60] sm:$0xff]
    %v867 = vld [vmem:[%s4 + $0x68] sm:$0xff]
    %v868 = vld [vmem:[%s4 + $0x70] sm:$0xff]
    %v869 = vld [vmem:[%s4 + $0x78] sm:$0xff]
    %v870 = vld [vmem:[%s5] sm:$0x1]
    %v871 = vunpack.c.l.bf16 %v846
    %v872 = vunpack.c.h.bf16 %v846
    %v873 = vunpack.c.l.bf16 %v847
    %v874 = vunpack.c.h.bf16 %v847
    %v875 = vunpack.c.l.bf16 %v848
    %v876 = vunpack.c.h.bf16 %v848
    %v877 = vunpack.c.l.bf16 %v849
    %v878 = vunpack.c.h.bf16 %v849
    %v879 = vunpack.c.l.bf16 %v850
    %v880 = vunpack.c.h.bf16 %v850
    %v881 = vunpack.c.l.bf16 %v851
    %v882 = vunpack.c.h.bf16 %v851
    %v883 = vunpack.c.l.bf16 %v852
    %v884 = vunpack.c.h.bf16 %v852
    %v885 = vunpack.c.l.bf16 %v853
    %v886 = vunpack.c.h.bf16 %v853
    %v887 = vmul.f32 %v871, %v385
    %v888 = vmul.f32 %v872, %v390
    %v889 = vmul.f32 %v873, %v395
    %v890 = vmul.f32 %v874, %v400
    %v891 = vmul.f32 %v875, %v405
    %v892 = vmul.f32 %v876, %v410
    %v893 = vmul.f32 %v877, %v415
    %v894 = vmul.f32 %v878, %v420
    %v895 = vmul.f32 %v879, %v425
    %v896 = vmul.f32 %v880, %v430
    %v897 = vmul.f32 %v881, %v435
    %v898 = vmul.f32 %v882, %v440
    %v899 = vmul.f32 %v883, %v445
    %v900 = vmul.f32 %v884, %v450
    %v901 = vmul.f32 %v885, %v455
    %v902 = vmul.f32 %v886, %v460
    %v903 = vpack.c.bf16 %v888, %v887
    %v904 = vpack.c.bf16 %v890, %v889
    %v905 = vpack.c.bf16 %v892, %v891
    %v906 = vpack.c.bf16 %v894, %v893
    %v907 = vpack.c.bf16 %v896, %v895
    %v908 = vpack.c.bf16 %v898, %v897
    %v909 = vpack.c.bf16 %v900, %v899
    %v910 = vpack.c.bf16 %v902, %v901
    %911 = vmatprep.subr.bf16.mxu0 0
    %912 = vmatpush1.bf16.msra.mxu0 %v903
    %913 = vmatprep.subr.bf16.mxu0 0
    %914 = vmatpush1.bf16.msra.mxu0 %v904
    %915 = vmatprep.subr.bf16.mxu0 0
    %916 = vmatpush1.bf16.msra.mxu0 %v905
    %917 = vmatprep.subr.bf16.mxu0 0
    %918 = vmatpush1.bf16.msra.mxu0 %v906
    %919 = vmatprep.subr.bf16.mxu0 0
    %920 = vmatpush1.bf16.msra.mxu0 %v907
    %921 = vmatprep.subr.bf16.mxu0 0
    %922 = vmatpush1.bf16.msra.mxu0 %v908
    %923 = vmatprep.subr.bf16.mxu0 0
    %924 = vmatpush1.bf16.msra.mxu0 %v909
    %925 = vmatprep.subr.bf16.mxu0 0
    %926 = vmatpush1.bf16.msra.mxu0 %v910
    %927 = vmatprep.subr.bf16.mxu0 0
    %928 = vmatpush1.bf16.msra.mxu0 0
    %929 = vmatprep.subr.bf16.mxu0 0
    %930 = vmatpush1.bf16.msra.mxu0 0
    %931 = vmatprep.subr.bf16.mxu0 0
    %932 = vmatpush1.bf16.msra.mxu0 0
    %933 = vmatprep.subr.bf16.mxu0 0
    %934 = vmatpush1.bf16.msra.mxu0 0
    %935 = vmatprep.subr.bf16.mxu0 0
    %936 = vmatpush1.bf16.msra.mxu0 0
    %937 = vmatprep.subr.bf16.mxu0 0
    %938 = vmatpush1.bf16.msra.mxu0 0
    %939 = vmatprep.subr.bf16.mxu0 0
    %940 = vmatpush1.bf16.msra.mxu0 0
    %941 = vmatprep.subr.bf16.mxu0 0
    %942 = vmatpush1.bf16.msra.mxu0 0
    %943 = vmatprep.mubr.bf16.mxu0 0
    %944 = vmatmul.mubr.bf16.gmra.mrb[0].mxu0 %v80
    %v945 = vpop.f32.mrb[0].mxu0
    %v946 = vadd.f32 0.0, %v945
    %v947 = vpop.f32.mrb[0].mxu0
    %v948 = vpop.f32.mrb[0].mxu0
    %v949 = vadd.f32 0.0, %v948
    %v950 = vpop.f32.mrb[0].mxu0
    %951 = vmatprep.mubr.bf16.mxu0 0
    %952 = vmatmul.mubr.bf16.gmra.mrb[0].mxu0 %v81
    %v953 = vpop.f32.mrb[0].mxu0
    %v954 = vadd.f32 0.0, %v953
    %v955 = vpop.f32.mrb[0].mxu0
    %v956 = vpop.f32.mrb[0].mxu0
    %v957 = vadd.f32 0.0, %v956
    %v958 = vpop.f32.mrb[0].mxu0
    %959 = vmatprep.mubr.bf16.mxu0 0
    %960 = vmatmul.mubr.bf16.gmra.mrb[0].mxu0 %v82
    %v961 = vpop.f32.mrb[0].mxu0
    %v962 = vadd.f32 0.0, %v961
    %v963 = vpop.f32.mrb[0].mxu0
    %v964 = vpop.f32.mrb[0].mxu0
    %v965 = vadd.f32 0.0, %v964
    %v966 = vpop.f32.mrb[0].mxu0
    %967 = vmatprep.mubr.bf16.mxu0 0
    %968 = vmatmul.mubr.bf16.gmra.mrb[0].mxu0 %v83
    %v969 = vpop.f32.mrb[0].mxu0
    %v970 = vadd.f32 0.0, %v969
    %v971 = vpop.f32.mrb[0].mxu0
    %v972 = vpop.f32.mrb[0].mxu0
    %v973 = vadd.f32 0.0, %v972
    %v974 = vpop.f32.mrb[0].mxu0
    %975 = vmatprep.mubr.bf16.mxu0 0
    %976 = vmatmul.mubr.bf16.gmra.mrb[0].mxu0 %v84
    %v977 = vpop.f32.mrb[0].mxu0
    %v978 = vadd.f32 0.0, %v977
    %v979 = vpop.f32.mrb[0].mxu0
    %v980 = vpop.f32.mrb[0].mxu0
    %v981 = vadd.f32 0.0, %v980
    %v982 = vpop.f32.mrb[0].mxu0
    %983 = vmatprep.mubr.bf16.mxu0 0
    %984 = vmatmul.mubr.bf16.gmra.mrb[0].mxu0 %v85
    %v985 = vpop.f32.mrb[0].mxu0
    %v986 = vadd.f32 0.0, %v985
    %v987 = vpop.f32.mrb[0].mxu0
    %v988 = vpop.f32.mrb[0].mxu0
    %v989 = vadd.f32 0.0, %v988
    %v990 = vpop.f32.mrb[0].mxu0
    %991 = vmatprep.mubr.bf16.mxu0 0
    %992 = vmatmul.mubr.bf16.gmra.mrb[0].mxu0 %v86
    %v993 = vpop.f32.mrb[0].mxu0
    %v994 = vadd.f32 0.0, %v993
    %v995 = vpop.f32.mrb[0].mxu0
    %v996 = vpop.f32.mrb[0].mxu0
    %v997 = vadd.f32 0.0, %v996
    %v998 = vpop.f32.mrb[0].mxu0
    %999 = vmatprep.mubr.bf16.mxu0 0
    %1000 = vmatmul.mubr.bf16.gmra.mrb[0].mxu0 %v87
    %v1001 = vpop.f32.mrb[0].mxu0
    %v1002 = vadd.f32 0.0, %v1001
    %v1003 = vpop.f32.mrb[0].mxu0
    %v1004 = vpop.f32.mrb[0].mxu0
    %v1005 = vadd.f32 0.0, %v1004
    %v1006 = vpop.f32.mrb[0].mxu0
    %1007 = vdwg.mxu0
    %v1008 = vmul.f32 %v946, %v586
    %v1009 = vmul.f32 %v949, %v591
    %v1010 = vmul.f32 %v954, %v596
    %v1011 = vmul.f32 %v957, %v601
    %v1012 = vmul.f32 %v962, %v606
    %v1013 = vmul.f32 %v965, %v611
    %v1014 = vmul.f32 %v970, %v616
    %v1015 = vmul.f32 %v973, %v621
    %v1016 = vmul.f32 %v978, %v626
    %v1017 = vmul.f32 %v981, %v631
    %v1018 = vmul.f32 %v986, %v636
    %v1019 = vmul.f32 %v989, %v641
    %v1020 = vmul.f32 %v994, %v646
    %v1021 = vmul.f32 %v997, %v651
    %v1022 = vmul.f32 %v1002, %v656
    %v1023 = vmul.f32 %v1005, %v661
    %v1025 = vlaneseq
    %v1026 = vshrl.u32 %v1025, 7
    %v1027 = vsub.s32 0, %v1026
    %v1028 = vrot.slane %v870, %v1027
    %1030 = vmatprep.subr.mxu0 0.0
    %1031 = vmatpush1.msra.mxu0 %v854
    %1032 = vmatprep.subr.mxu0 0.0
    %1033 = vmatpush1.msra.mxu0 %v855
    %1034 = vmatprep.subr.mxu0 0.0
    %1035 = vmatpush1.msra.mxu0 %v856
    %1036 = vmatprep.subr.mxu0 0.0
    %1037 = vmatpush1.msra.mxu0 %v857
    %1038 = vmatprep.subr.mxu0 0.0
    %1039 = vmatpush1.msra.mxu0 %v858
    %1040 = vmatprep.subr.mxu0 0.0
    %1041 = vmatpush1.msra.mxu0 %v859
    %1042 = vmatprep.subr.mxu0 0.0
    %1043 = vmatpush1.msra.mxu0 %v860
    %1044 = vmatprep.subr.mxu0 0.0
    %1045 = vmatpush1.msra.mxu0 %v861
    %1046 = vmatprep.subr.mxu0 0.0
    %1047 = vmatpush1.msra.mxu0 %v862
    %1048 = vmatprep.subr.mxu0 0.0
    %1049 = vmatpush1.msra.mxu0 %v863
    %1050 = vmatprep.subr.mxu0 0.0
    %1051 = vmatpush1.msra.mxu0 %v864
    %1052 = vmatprep.subr.mxu0 0.0
    %1053 = vmatpush1.msra.mxu0 %v865
    %1054 = vmatprep.subr.mxu0 0.0
    %1055 = vmatpush1.msra.mxu0 %v866
    %1056 = vmatprep.subr.mxu0 0.0
    %1057 = vmatpush1.msra.mxu0 %v867
    %1058 = vmatprep.subr.mxu0 0.0
    %1059 = vmatpush1.msra.mxu0 %v868
    %1060 = vmatprep.subr.mxu0 0.0
    %1061 = vmatpush1.msra.mxu0 %v869
    %1062 = vmatprep.subr.mxu0 0.0
    %1063 = vmatpush1.msra.mxu0 0.0
    %1064 = vmatprep.subr.mxu0 0.0
    %1065 = vmatpush1.msra.mxu0 0.0
    %1066 = vmatprep.subr.mxu0 0.0
    %1067 = vmatpush1.msra.mxu0 0.0
    %1068 = vmatprep.subr.mxu0 0.0
    %1069 = vmatpush1.msra.mxu0 0.0
    %1070 = vmatprep.subr.mxu0 0.0
    %1071 = vmatpush1.msra.mxu0 0.0
    %1072 = vmatprep.subr.mxu0 0.0
    %1073 = vmatpush1.msra.mxu0 0.0
    %1074 = vmatprep.subr.mxu0 0.0
    %1075 = vmatpush1.msra.mxu0 0.0
    %1076 = vmatprep.subr.mxu0 0.0
    %1077 = vmatpush1.msra.mxu0 0.0
    %1078 = vmatprep.subr.mxu0 0.0
    %1079 = vmatpush1.msra.mxu0 0.0
    %1080 = vmatprep.subr.mxu0 0.0
    %1081 = vmatpush1.msra.mxu0 0.0
    %1082 = vmatprep.subr.mxu0 0.0
    %1083 = vmatpush1.msra.mxu0 0.0
    %1084 = vmatprep.subr.mxu0 0.0
    %1085 = vmatpush1.msra.mxu0 0.0
    %1086 = vmatprep.subr.mxu0 0.0
    %1087 = vmatpush1.msra.mxu0 0.0
    %1088 = vmatprep.subr.mxu0 0.0
    %1089 = vmatpush1.msra.mxu0 0.0
    %1090 = vmatprep.subr.mxu0 0.0
    %1091 = vmatpush1.msra.mxu0 0.0
    %1092 = vmatprep.subr.mxu0 0.0
    %1093 = vmatpush1.msra.mxu0 0.0
    %1094 = vmatprep.mubr.f32.mxu0 0.0
    %1095 = vmatmul.mubr.f32.gmra.mrb[0].mxu0 %v1008
    %v1096 = vpop.f32.mrb[0].mxu0
    %v1097 = vadd.f32 %v1028, %v1096
    %v1098 = vpop.f32.mrb[0].mxu0
    %1099 = vmatprep.mubr.f32.mxu0 0.0
    %1100 = vmatmul.mubr.f32.gmra.mrb[0].mxu0 %v1009
    %v1101 = vpop.f32.mrb[0].mxu0
    %v1102 = vadd.f32 %v1028, %v1101
    %v1103 = vpop.f32.mrb[0].mxu0
    %1104 = vmatprep.mubr.f32.mxu0 0.0
    %1105 = vmatmul.mubr.f32.gmra.mrb[0].mxu0 %v1010
    %v1106 = vpop.f32.mrb[0].mxu0
    %v1107 = vadd.f32 %v1028, %v1106
    %v1108 = vpop.f32.mrb[0].mxu0
    %1109 = vmatprep.mubr.f32.mxu0 0.0
    %1110 = vmatmul.mubr.f32.gmra.mrb[0].mxu0 %v1011
    %v1111 = vpop.f32.mrb[0].mxu0
    %v1112 = vadd.f32 %v1028, %v1111
    %v1113 = vpop.f32.mrb[0].mxu0
    %1114 = vmatprep.mubr.f32.mxu0 0.0
    %1115 = vmatmul.mubr.f32.gmra.mrb[0].mxu0 %v1012
    %v1116 = vpop.f32.mrb[0].mxu0
    %v1117 = vadd.f32 %v1028, %v1116
    %v1118 = vpop.f32.mrb[0].mxu0
    %1119 = vmatprep.mubr.f32.mxu0 0.0
    %1120 = vmatmul.mubr.f32.gmra.mrb[0].mxu0 %v1013
    %v1121 = vpop.f32.mrb[0].mxu0
    %v1122 = vadd.f32 %v1028, %v1121
    %v1123 = vpop.f32.mrb[0].mxu0
    %1124 = vmatprep.mubr.f32.mxu0 0.0
    %1125 = vmatmul.mubr.f32.gmra.mrb[0].mxu0 %v1014
    %v1126 = vpop.f32.mrb[0].mxu0
    %v1127 = vadd.f32 %v1028, %v1126
    %v1128 = vpop.f32.mrb[0].mxu0
    %1129 = vmatprep.mubr.f32.mxu0 0.0
    %1130 = vmatmul.mubr.f32.gmra.mrb[0].mxu0 %v1015
    %v1131 = vpop.f32.mrb[0].mxu0
    %v1132 = vadd.f32 %v1028, %v1131
    %v1133 = vpop.f32.mrb[0].mxu0
    %1134 = vmatprep.mubr.f32.mxu0 0.0
    %1135 = vmatmul.mubr.f32.gmra.mrb[0].mxu0 %v1016
    %v1136 = vpop.f32.mrb[0].mxu0
    %v1137 = vadd.f32 %v1028, %v1136
    %v1138 = vpop.f32.mrb[0].mxu0
    %1139 = vmatprep.mubr.f32.mxu0 0.0
    %1140 = vmatmul.mubr.f32.gmra.mrb[0].mxu0 %v1017
    %v1141 = vpop.f32.mrb[0].mxu0
    %v1142 = vadd.f32 %v1028, %v1141
    %v1143 = vpop.f32.mrb[0].mxu0
    %1144 = vmatprep.mubr.f32.mxu0 0.0
    %1145 = vmatmul.mubr.f32.gmra.mrb[0].mxu0 %v1018
    %v1146 = vpop.f32.mrb[0].mxu0
    %v1147 = vadd.f32 %v1028, %v1146
    %v1148 = vpop.f32.mrb[0].mxu0
    %1149 = vmatprep.mubr.f32.mxu0 0.0
    %1150 = vmatmul.mubr.f32.gmra.mrb[0].mxu0 %v1019
    %v1151 = vpop.f32.mrb[0].mxu0
    %v1152 = vadd.f32 %v1028, %v1151
    %v1153 = vpop.f32.mrb[0].mxu0
    %1154 = vmatprep.mubr.f32.mxu0 0.0
    %1155 = vmatmul.mubr.f32.gmra.mrb[0].mxu0 %v1020
    %v1156 = vpop.f32.mrb[0].mxu0
    %v1157 = vadd.f32 %v1028, %v1156
    %v1158 = vpop.f32.mrb[0].mxu0
    %1159 = vmatprep.mubr.f32.mxu0 0.0
    %1160 = vmatmul.mubr.f32.gmra.mrb[0].mxu0 %v1021
    %v1161 = vpop.f32.mrb[0].mxu0
    %v1162 = vadd.f32 %v1028, %v1161
    %v1163 = vpop.f32.mrb[0].mxu0
    %1164 = vmatprep.mubr.f32.mxu0 0.0
    %1165 = vmatmul.mubr.f32.gmra.mrb[0].mxu0 %v1022
    %v1166 = vpop.f32.mrb[0].mxu0
    %v1167 = vadd.f32 %v1028, %v1166
    %v1168 = vpop.f32.mrb[0].mxu0
    %1169 = vmatprep.mubr.f32.mxu0 0.0
    %1170 = vmatmul.mubr.f32.gmra.mrb[0].mxu0 %v1023
    %v1171 = vpop.f32.mrb[0].mxu0
    %v1172 = vadd.f32 %v1028, %v1171
    %v1173 = vpop.f32.mrb[0].mxu0
    %1174 = vdwg.mxu0
    %v1175 = vmax.f32 %v1097, 0.0
    %v1176 = vmax.f32 %v1102, 0.0
    %v1177 = vmax.f32 %v1107, 0.0
    %v1178 = vmax.f32 %v1112, 0.0
    %v1179 = vmax.f32 %v1117, 0.0
    %v1180 = vmax.f32 %v1122, 0.0
    %v1181 = vmax.f32 %v1127, 0.0
    %v1182 = vmax.f32 %v1132, 0.0
    %v1183 = vmax.f32 %v1137, 0.0
    %v1184 = vmax.f32 %v1142, 0.0
    %v1185 = vmax.f32 %v1147, 0.0
    %v1186 = vmax.f32 %v1152, 0.0
    %v1187 = vmax.f32 %v1157, 0.0
    %v1188 = vmax.f32 %v1162, 0.0
    %v1189 = vmax.f32 %v1167, 0.0
    %v1190 = vmax.f32 %v1172, 0.0
    %v1191 = vadd.f32 %v1175, %v871
    %v1192 = vadd.f32 %v1176, %v872
    %v1193 = vadd.f32 %v1177, %v873
    %v1194 = vadd.f32 %v1178, %v874
    %v1195 = vadd.f32 %v1179, %v875
    %v1196 = vadd.f32 %v1180, %v876
    %v1197 = vadd.f32 %v1181, %v877
    %v1198 = vadd.f32 %v1182, %v878
    %v1199 = vadd.f32 %v1183, %v879
    %v1200 = vadd.f32 %v1184, %v880
    %v1201 = vadd.f32 %v1185, %v881
    %v1202 = vadd.f32 %v1186, %v882
    %v1203 = vadd.f32 %v1187, %v883
    %v1204 = vadd.f32 %v1188, %v884
    %v1205 = vadd.f32 %v1189, %v885
    %v1206 = vadd.f32 %v1190, %v886
    %v1207 = vpack.c.bf16 %v1192, %v1191
    %v1208 = vpack.c.bf16 %v1194, %v1193
    %v1209 = vpack.c.bf16 %v1196, %v1195
    %v1210 = vpack.c.bf16 %v1198, %v1197
    %v1211 = vpack.c.bf16 %v1200, %v1199
    %v1212 = vpack.c.bf16 %v1202, %v1201
    %v1213 = vpack.c.bf16 %v1204, %v1203
    %v1214 = vpack.c.bf16 %v1206, %v1205
    %v1215 = vlaneseq
    %v1216 = vand.u32 %v1215, 127
    %vm1217 = vcmp.lt.s32.totalorder %v1216, 16
    %v1218 = vsel %vm1217, 1, 0
    %v1219 = vcvt.s32.f32 %v1218
    %v1220 = vpack.c.bf16 %v1219, %v1219
    %1221 = vmatprep.subr.bf16.mxu0 0
    %1222 = vmatpush1.bf16.msra.mxu0 %v1207
    %1223 = vmatprep.subr.bf16.mxu0 0
    %1224 = vmatpush1.bf16.msra.mxu0 %v1208
    %1225 = vmatprep.subr.bf16.mxu0 0
    %1226 = vmatpush1.bf16.msra.mxu0 %v1209
    %1227 = vmatprep.subr.bf16.mxu0 0
    %1228 = vmatpush1.bf16.msra.mxu0 %v1210
    %1229 = vmatprep.subr.bf16.mxu0 0
    %1230 = vmatpush1.bf16.msra.mxu0 %v1211
    %1231 = vmatprep.subr.bf16.mxu0 0
    %1232 = vmatpush1.bf16.msra.mxu0 %v1212
    %1233 = vmatprep.subr.bf16.mxu0 0
    %1234 = vmatpush1.bf16.msra.mxu0 %v1213
    %1235 = vmatprep.subr.bf16.mxu0 0
    %1236 = vmatpush1.bf16.msra.mxu0 %v1214
    %1237 = vmatprep.subr.bf16.mxu0 0
    %1238 = vmatpush1.bf16.msra.mxu0 0
    %1239 = vmatprep.subr.bf16.mxu0 0
    %1240 = vmatpush1.bf16.msra.mxu0 0
    %1241 = vmatprep.subr.bf16.mxu0 0
    %1242 = vmatpush1.bf16.msra.mxu0 0
    %1243 = vmatprep.subr.bf16.mxu0 0
    %1244 = vmatpush1.bf16.msra.mxu0 0
    %1245 = vmatprep.subr.bf16.mxu0 0
    %1246 = vmatpush1.bf16.msra.mxu0 0
    %1247 = vmatprep.subr.bf16.mxu0 0
    %1248 = vmatpush1.bf16.msra.mxu0 0
    %1249 = vmatprep.subr.bf16.mxu0 0
    %1250 = vmatpush1.bf16.msra.mxu0 0
    %1251 = vmatprep.subr.bf16.mxu0 0
    %1252 = vmatpush1.bf16.msra.mxu0 0
    %1253 = vmatprep.mubr.bf16.mxu0 0
    %1254 = vmatmul.mubr.bf16.gmra.mrb[0].mxu0 %v1220
    %v1255 = vpop.f32.mrb[0].mxu0
    %v1256 = vadd.f32 0.0, %v1255
    %v1257 = vpop.f32.mrb[0].mxu0
    %v1258 = vpop.f32.mrb[0].mxu0
    %v1259 = vpop.f32.mrb[0].mxu0
    %1260 = vdwg.mxu0
    %v1261 = vld [vmem:[%s6] sm:$0xff]
    %v1262 = vld [vmem:[%s6 + $0x8] sm:$0xff]
    %v1263 = vld [vmem:[%s6 + $0x10] sm:$0xff]
    %v1264 = vld [vmem:[%s6 + $0x18] sm:$0xff]
    %v1265 = vld [vmem:[%s6 + $0x20] sm:$0xff]
    %v1266 = vld [vmem:[%s6 + $0x28] sm:$0xff]
    %v1267 = vld [vmem:[%s6 + $0x30] sm:$0xff]
    %v1268 = vld [vmem:[%s6 + $0x38] sm:$0xff]
    %v1269 = vld [vmem:[%s6 + $0x40] sm:$0xff]
    %v1270 = vld [vmem:[%s6 + $0x48] sm:$0xff]
    %v1271 = vld [vmem:[%s6 + $0x50] sm:$0xff]
    %v1272 = vld [vmem:[%s6 + $0x58] sm:$0xff]
    %v1273 = vld [vmem:[%s6 + $0x60] sm:$0xff]
    %v1274 = vld [vmem:[%s6 + $0x68] sm:$0xff]
    %v1275 = vld [vmem:[%s6 + $0x70] sm:$0xff]
    %v1276 = vld [vmem:[%s6 + $0x78] sm:$0xff]
    %v1277 = vld [vmem:[%s7] sm:$0x1]
    %1278 = vmatprep.subr.mxu0 0.0
    %1279 = vmatpush1.msra.mxu0 %v1261
    %1280 = vmatprep.subr.mxu0 0.0
    %1281 = vmatpush1.msra.mxu0 %v1262
    %1282 = vmatprep.subr.mxu0 0.0
    %1283 = vmatpush1.msra.mxu0 %v1263
    %1284 = vmatprep.subr.mxu0 0.0
    %1285 = vmatpush1.msra.mxu0 %v1264
    %1286 = vmatprep.subr.mxu0 0.0
    %1287 = vmatpush1.msra.mxu0 %v1265
    %1288 = vmatprep.subr.mxu0 0.0
    %1289 = vmatpush1.msra.mxu0 %v1266
    %1290 = vmatprep.subr.mxu0 0.0
    %1291 = vmatpush1.msra.mxu0 %v1267
    %1292 = vmatprep.subr.mxu0 0.0
    %1293 = vmatpush1.msra.mxu0 %v1268
    %1294 = vmatprep.subr.mxu0 0.0
    %1295 = vmatpush1.msra.mxu0 %v1269
    %1296 = vmatprep.subr.mxu0 0.0
    %1297 = vmatpush1.msra.mxu0 %v1270
    %1298 = vmatprep.subr.mxu0 0.0
    %1299 = vmatpush1.msra.mxu0 %v1271
    %1300 = vmatprep.subr.mxu0 0.0
    %1301 = vmatpush1.msra.mxu0 %v1272
    %1302 = vmatprep.subr.mxu0 0.0
    %1303 = vmatpush1.msra.mxu0 %v1273
    %1304 = vmatprep.subr.mxu0 0.0
    %1305 = vmatpush1.msra.mxu0 %v1274
    %1306 = vmatprep.subr.mxu0 0.0
    %1307 = vmatpush1.msra.mxu0 %v1275
    %1308 = vmatprep.subr.mxu0 0.0
    %1309 = vmatpush1.msra.mxu0 %v1276
    %1310 = vmatprep.subr.mxu0 0.0
    %1311 = vmatpush1.msra.mxu0 0.0
    %1312 = vmatprep.subr.mxu0 0.0
    %1313 = vmatpush1.msra.mxu0 0.0
    %1314 = vmatprep.subr.mxu0 0.0
    %1315 = vmatpush1.msra.mxu0 0.0
    %1316 = vmatprep.subr.mxu0 0.0
    %1317 = vmatpush1.msra.mxu0 0.0
    %1318 = vmatprep.subr.mxu0 0.0
    %1319 = vmatpush1.msra.mxu0 0.0
    %1320 = vmatprep.subr.mxu0 0.0
    %1321 = vmatpush1.msra.mxu0 0.0
    %1322 = vmatprep.subr.mxu0 0.0
    %1323 = vmatpush1.msra.mxu0 0.0
    %1324 = vmatprep.subr.mxu0 0.0
    %1325 = vmatpush1.msra.mxu0 0.0
    %1326 = vmatprep.subr.mxu0 0.0
    %1327 = vmatpush1.msra.mxu0 0.0
    %1328 = vmatprep.subr.mxu0 0.0
    %1329 = vmatpush1.msra.mxu0 0.0
    %1330 = vmatprep.subr.mxu0 0.0
    %1331 = vmatpush1.msra.mxu0 0.0
    %1332 = vmatprep.subr.mxu0 0.0
    %1333 = vmatpush1.msra.mxu0 0.0
    %1334 = vmatprep.subr.mxu0 0.0
    %1335 = vmatpush1.msra.mxu0 0.0
    %1336 = vmatprep.subr.mxu0 0.0
    %1337 = vmatpush1.msra.mxu0 0.0
    %1338 = vmatprep.subr.mxu0 0.0
    %1339 = vmatpush1.msra.mxu0 0.0
    %1340 = vmatprep.subr.mxu0 0.0
    %1341 = vmatpush1.msra.mxu0 0.0
    %1342 = vmatprep.mubr.f32.mxu0 0.0
    %1343 = vmatmul.mubr.f32.gmra.mrb[0].mxu0 %v1256
    %v1344 = vpop.f32.mrb[0].mxu0
    %v1345 = vadd.f32 %v1277, %v1344
    %v1346 = vpop.f32.mrb[0].mxu0
    %1347 = vdwg.mxu0
    %1348 = vst [vmem:[#allocation2] sm:$0x1] %v1345
    // Predicated region
    $region34: #{gcn_forward.1} parent=1 // pred_check
      _
    $region35: #{gcn_forward.1} parent=1 // pred_check_branch
      %1350 = sbr.rel (0) target = $region37
    $region36: #{gcn_forward.1} parent=1 // pred_region
      %s1352 = ssub.s32 16, 16
      %1353 = vsyncadd [#allocation3], %s1352
      %s1355 = sshll.u32 [#allocation2], 4
      %s1356 = int_to_ptr.vmem [resolvable:$true] %s1355
      %1358 = dma.vmem_to_hbm [thread:$0]  %s1356, 16, %s8, [#allocation3]
    $region37: #{gcn_forward.1} parent=1 // pred_fallthru
      _
    // Predicated region
    $region38: #{gcn_forward.1} parent=1 // pred_check
      _
    $region39: #{gcn_forward.1} parent=1 // pred_check_branch
      %1360 = sbr.rel (0) target = $region41
    $region40: #{gcn_forward.1} parent=1 // pred_region
      %1361 = dma.done [#allocation3], 16
    $region41: #{gcn_forward.1} parent=1 // pred_fallthru
      _
    %1362 = vsyncpa [#allocation3], 1

</llo_original>
